<compile_context>
chip_gen: v6e
topology: v6e:2x2x1
jax: 0.10.0
libtpu: 0.0.40
codegen_flags: <defaults>
</compile_context>

<pallas_src>
import functools

import jax
import jax.numpy as jnp
from jax.experimental import pallas as pl
from jax.experimental.pallas import tpu as pltpu

EPS = 1e-5
LANES = 128


# ---------------------------------------------------------------------------
# small static helpers
# ---------------------------------------------------------------------------
def _round_up(v, m):
    return ((v + m - 1) // m) * m


def _pick_divisor(total, target):
    """Largest divisor of `total` that is <= target (>=1)."""
    for cand in range(min(total, max(target, 1)), 0, -1):
        if total % cand == 0:
            return cand
    return total


def _pick_row_tile(total, target):
    """Largest multiple-of-8 divisor of `total` <= target, else `total`."""
    cand = min(total, target)
    cand -= cand % 8
    while cand >= 8:
        if total % cand == 0:
            return cand
        cand -= 8
    return total


def _pad_last(x, target):
    pad = target - x.shape[-1]
    if pad == 0:
        return x
    cfg = [(0, 0)] * (x.ndim - 1) + [(0, pad)]
    return jnp.pad(x, cfg)


def _make_taps(ksize, stride):
    """Tap list [(plane, drow, dcol), ...] for the plane-decomposed gather."""
    taps = []
    for kh in range(ksize):
        for kw in range(ksize):
            taps.append(((kh % stride) * stride + (kw % stride),
                         kh // stride, kw // stride))
    return taps


def _make_planes(xpad, stride, hq, wq, dtype):
    """(N, Hp, Wp, C) -> (N*stride^2, hq, wq, C): even/odd plane split so that
    strided taps become contiguous slices inside the kernel."""
    n, _, _, c = xpad.shape
    planes = []
    for rh in range(stride):
        for rc in range(stride):
            p = xpad[:, rh::stride, rc::stride, :]
            ph, pw = p.shape[1], p.shape[2]
            p = jnp.pad(p, ((0, 0), (0, max(0, hq - ph)),
                            (0, max(0, wq - pw)), (0, 0)))
            planes.append(p[:, :hq, :wq, :])
    out = jnp.stack(planes, axis=1)                      # (N, P, hq, wq, C)
    return out.reshape(n * stride * stride, hq, wq, c).astype(dtype)


def _fold_weight(w_oihw, cin_p, cout_p):
    """PyTorch (Cout, Cin, Kh, Kw) -> (Kh*Kw*Cin_p, Cout_p) bf16, tap-major."""
    co, ci, kh, kw = w_oihw.shape
    w = jnp.transpose(w_oihw.astype(jnp.float32), (2, 3, 1, 0))  # (kh,kw,ci,co)
    w = jnp.pad(w, ((0, 0), (0, 0), (0, cin_p - ci), (0, cout_p - co)))
    return w.reshape(kh * kw * cin_p, cout_p).astype(jnp.bfloat16)


# ---------------------------------------------------------------------------
# Pallas kernel 1: conv tile as a single big-K matmul + partial BN statistics.
# grid = (N, row_tiles), both "parallel".
# ---------------------------------------------------------------------------
def _conv_kernel(x_ref, w_ref, y_ref, stats_ref, *, taps, th, wo, rows,
                 relu_input):
    t = pl.program_id(1)
    r0 = t * th
    # halo window for this row tile: (P, rows, Wq, C), loaded once from VMEM.
    win = x_ref[:, pl.ds(r0, rows), :, :]
    if relu_input:
        win = jnp.maximum(win, 0)
    # gather the taps (contiguous slices only) and fold them along K.
    pieces = [win[p, dr:dr + th, dc:dc + wo, :] for (p, dr, dc) in taps]
    xmat = pieces[0] if len(pieces) == 1 else jnp.concatenate(pieces, axis=-1)
    xmat = xmat.reshape(th * wo, xmat.shape[-1])          # (M_tile, T*Cin)
    y = jnp.dot(xmat, w_ref[...], preferred_element_type=jnp.float32)
    y_ref[...] = y.reshape(y_ref.shape)
    s1 = jnp.sum(y, axis=0, keepdims=True)
    s2 = jnp.sum(y * y, axis=0, keepdims=True)
    stats_ref[...] = jnp.concatenate([s1, s2], axis=0).reshape(stats_ref.shape)


def conv_stats(planes, w_fold, *, n, taps, ho, wo, th, relu_input):
    """planes: (N*P, Hq, Wq, Cin_p) bf16; w_fold: (T*Cin_p, Cout_p) bf16.
    Returns raw conv output (N, Ho, Wo, Cout_p) f32 and per-tile
    (sum, sum_sq) statistics (N, row_tiles, 2, Cout_p) f32."""
    npp, hq, wq, c = planes.shape
    p = npp // n
    ktot, cout = w_fold.shape
    assert ktot == len(taps) * c
    t_tiles = ho // th
    assert t_tiles * th == ho
    max_dr = max(dr for _, dr, _ in taps)
    max_dc = max(dc for _, _, dc in taps)
    rows = th + max_dr
    assert (t_tiles - 1) * th + rows <= hq
    assert wo + max_dc <= wq

    kernel = functools.partial(_conv_kernel, taps=taps, th=th, wo=wo,
                               rows=rows, relu_input=relu_input)
    return pl.pallas_call(
        kernel,
        out_shape=(jax.ShapeDtypeStruct((n, ho, wo, cout), jnp.float32),
                   jax.ShapeDtypeStruct((n, t_tiles, 2, cout), jnp.float32)),
        grid_spec=pltpu.PrefetchScalarGridSpec(
            num_scalar_prefetch=0,
            grid=(n, t_tiles),
            in_specs=[
                pl.BlockSpec((p, hq, wq, c), lambda i, j: (i, 0, 0, 0)),
                pl.BlockSpec((ktot, cout), lambda i, j: (0, 0)),
            ],
            out_specs=[
                pl.BlockSpec((1, th, wo, cout), lambda i, j: (i, j, 0, 0)),
                pl.BlockSpec((1, 1, 2, cout), lambda i, j: (i, j, 0, 0)),
            ]),
        compiler_params=pltpu.CompilerParams(
            dimension_semantics=("parallel", "parallel")),
    )(planes, w_fold)


# ---------------------------------------------------------------------------
# Pallas kernel 2: BN-apply epilogue: y*scale+shift (+relu) (+residual).
# grid = (M // tm,), "parallel".  Residual inputs only present when needed.
# ---------------------------------------------------------------------------
def _ew_kernel(*refs, relu_out, res_mode):
    y_ref, ss_ref = refs[0], refs[1]
    o_ref = refs[-1]
    ss = ss_ref[...]                                      # (2, C) f32
    y = y_ref[...].astype(jnp.float32) * ss[0:1, :] + ss[1:2, :]
    if relu_out:
        y = jnp.maximum(y, 0.0)
    if res_mode == "relu":
        y = y + jnp.maximum(refs[2][...].astype(jnp.float32), 0.0)
    elif res_mode == "affine":
        rss = refs[3][...]
        y = y + (refs[2][...].astype(jnp.float32) * rss[0:1, :] + rss[1:2, :])
    o_ref[...] = y.astype(o_ref.dtype)


def ew_affine(y, scale_shift, *, relu_out, res=None, res_scale_shift=None,
              out_dtype=jnp.float32):
    m, c = y.shape
    tm = _pick_row_tile(m, 1024)
    inputs = [y, scale_shift]
    specs = [pl.BlockSpec((tm, c), lambda i: (i, 0)),
             pl.BlockSpec((2, c), lambda i: (0, 0))]
    res_mode = "none"
    if res is not None:
        inputs.append(res)
        specs.append(pl.BlockSpec((tm, c), lambda i: (i, 0)))
        if res_scale_shift is not None:
            res_mode = "affine"
            inputs.append(res_scale_shift)
            specs.append(pl.BlockSpec((2, c), lambda i: (0, 0)))
        else:
            res_mode = "relu"
    kernel = functools.partial(_ew_kernel, relu_out=relu_out, res_mode=res_mode)
    return pl.pallas_call(
        kernel,
        out_shape=jax.ShapeDtypeStruct((m, c), out_dtype),
        grid_spec=pltpu.PrefetchScalarGridSpec(
            num_scalar_prefetch=0,
            grid=(m // tm,),
            in_specs=specs,
            out_specs=pl.BlockSpec((tm, c), lambda i: (i, 0))),
        compiler_params=pltpu.CompilerParams(
            dimension_semantics=("parallel",)),
    )(*inputs)


# ---------------------------------------------------------------------------
# BN batch-stat finalize (tiny XLA math on (2, C) partial sums).
# ---------------------------------------------------------------------------
def _bn_scale_shift(stats, gamma, beta, m, cout_p):
    s = jnp.sum(stats, axis=(0, 1))                       # (2, Cout_p)
    mean = s[0] / m
    var = jnp.maximum(s[1] / m - mean * mean, 0.0)        # biased (training BN)
    g = _pad_last(gamma.astype(jnp.float32), cout_p)      # padded gammas are 0
    b = _pad_last(beta.astype(jnp.float32), cout_p)
    scale = g * jax.lax.rsqrt(var + EPS)
    shift = b - mean * scale
    return jnp.stack([scale, shift], axis=0)              # (2, Cout_p)


# ---------------------------------------------------------------------------
# WRNBlock forward (wrapper around the Pallas kernels).
# ---------------------------------------------------------------------------
def wrn_block_forward(x_nchw, params, *, in_planes, out_planes, stride,
                      drop_rate=0.0):
    assert drop_rate == 0.0  # TODO(synk): dropout not implemented
    n, c, h, w = x_nchw.shape
    assert c == in_planes
    if in_planes == out_planes:
        assert stride == 1, "identity shortcut requires stride 1"

    cin_p = _round_up(in_planes, LANES)
    cout_p = _round_up(out_planes, LANES)

    x = jnp.transpose(x_nchw, (0, 2, 3, 1)).astype(jnp.float32)   # NHWC
    x_cp = _pad_last(x, cin_p)                                    # (N,H,W,Cin_p)

    ho = (h + 2 - 3) // stride + 1
    wo = (w + 2 - 3) // stride + 1
    m = n * ho * wo
    th = _pick_divisor(ho, max(1, 512 // max(wo, 1)))

    # ---- conv1 (3x3, stride s, pad 1) with the input-relu fused in-kernel
    max_d1 = (3 - 1) // stride
    hq1, wq1 = ho + max_d1, wo + max_d1
    xpad = jnp.pad(x_cp, ((0, 0), (1, 1), (1, 1), (0, 0)))
    planes1 = _make_planes(xpad, stride, hq1, wq1, jnp.bfloat16)
    w1 = _fold_weight(params["conv1_w"], cin_p, cout_p)
    y1, st1 = conv_stats(planes1, w1, n=n, taps=_make_taps(3, stride),
                         ho=ho, wo=wo, th=th, relu_input=True)
    ss1 = _bn_scale_shift(st1, params["bn1_g"], params["bn1_b"], m, cout_p)
    a1 = ew_affine(y1.reshape(m, cout_p), ss1, relu_out=True,
                   out_dtype=jnp.bfloat16)                        # bf16 -> MXU
    a1 = a1.reshape(n, ho, wo, cout_p)

    # ---- conv2 (3x3, stride 1, pad 1); a1 is already rectified
    a1pad = jnp.pad(a1, ((0, 0), (1, 1), (1, 1), (0, 0)))
    planes2 = _make_planes(a1pad, 1, ho + 2, wo + 2, jnp.bfloat16)
    w2 = _fold_weight(params["conv2_w"], cout_p, cout_p)
    y2, st2 = conv_stats(planes2, w2, n=n, taps=_make_taps(3, 1),
                         ho=ho, wo=wo, th=th, relu_input=False)
    ss2 = _bn_scale_shift(st2, params["bn2_g"], params["bn2_b"], m, cout_p)

    # ---- shortcut branch
    if in_planes != out_planes:
        xs = x_cp[:, ::stride, ::stride, :]                       # (N,Ho,Wo,Cin_p)
        planes_s = xs.astype(jnp.bfloat16)                        # P = 1
        ws = _fold_weight(params["convs_w"], cin_p, cout_p)
        ys, sts = conv_stats(planes_s, ws, n=n, taps=[(0, 0, 0)],
                             ho=ho, wo=wo, th=th, relu_input=True)
        ss_s = _bn_scale_shift(sts, params["bns_g"], params["bns_b"], m, cout_p)
        res = ys.reshape(m, cout_p)
        res_ss = ss_s
    else:
        res = x_cp.reshape(m, cout_p)   # relu applied inside the ew kernel
        res_ss = None

    # ---- bn2 apply + residual add, fused in one elementwise kernel
    out = ew_affine(y2.reshape(m, cout_p), ss2, relu_out=False,
                    res=res, res_scale_shift=res_ss, out_dtype=jnp.float32)
    out = out.reshape(n, ho, wo, cout_p)[..., :out_planes]
    return jnp.transpose(out, (0, 3, 1, 2))                       # back to NCHW


# ---------------------------------------------------------------------------
# Pure-JAX reference (correctness check only).
# ---------------------------------------------------------------------------
def _conv2d_ref(x, w, stride, pad):
    return jax.lax.conv_general_dilated(
        x, w, (stride, stride), ((pad, pad), (pad, pad)),
        dimension_numbers=("NCHW", "OIHW", "NCHW"))


def _bn_train_ref(y, g, b):
    mean = jnp.mean(y, axis=(0, 2, 3), keepdims=True)
    var = jnp.mean(jnp.square(y - mean), axis=(0, 2, 3), keepdims=True)
    return (y - mean) * jax.lax.rsqrt(var + EPS) * g.reshape(1, -1, 1, 1) \
        + b.reshape(1, -1, 1, 1)


def wrn_block_ref(x, p, *, in_planes, out_planes, stride):
    r = jnp.maximum(x, 0.0)
    o = _conv2d_ref(r, p["conv1_w"], stride, 1)
    o = jnp.maximum(_bn_train_ref(o, p["bn1_g"], p["bn1_b"]), 0.0)
    o = _conv2d_ref(o, p["conv2_w"], 1, 1)
    o = _bn_train_ref(o, p["bn2_g"], p["bn2_b"])
    if in_planes != out_planes:
        idn = _bn_train_ref(_conv2d_ref(r, p["convs_w"], stride, 0),
                            p["bns_g"], p["bns_b"])
    else:
        idn = r
    return o + idn


# ---------------------------------------------------------------------------
# Deterministic synthetic parameter init (shapes from WRNBlock.__init__).
# ---------------------------------------------------------------------------
def init_params(key, in_planes, out_planes):
    ks = jax.random.split(key, 8)
    p = {
        "conv1_w": jax.random.normal(ks[0], (out_planes, in_planes, 3, 3),
                                     jnp.float32) / jnp.sqrt(9.0 * in_planes),
        "conv2_w": jax.random.normal(ks[1], (out_planes, out_planes, 3, 3),
                                     jnp.float32) / jnp.sqrt(9.0 * out_planes),
        "bn1_g": 1.0 + 0.1 * jax.random.normal(ks[2], (out_planes,), jnp.float32),
        "bn1_b": 0.1 * jax.random.normal(ks[3], (out_planes,), jnp.float32),
        "bn2_g": 1.0 + 0.1 * jax.random.normal(ks[4], (out_planes,), jnp.float32),
        "bn2_b": 0.1 * jax.random.normal(ks[5], (out_planes,), jnp.float32),
    }
    if in_planes != out_planes:
        p["convs_w"] = jax.random.normal(ks[6], (out_planes, in_planes, 1, 1),
                                         jnp.float32) / jnp.sqrt(1.0 * in_planes)
        p["bns_g"] = 1.0 + 0.1 * jax.random.normal(ks[7], (out_planes,),
                                                   jnp.float32)
        p["bns_b"] = jnp.zeros((out_planes,), jnp.float32)
    return p


if __name__ == "__main__":
    key = jax.random.PRNGKey(0)

    # bf16 MXU operands (per the perf guidance) => compare with a looser
    # tolerance than pure-f32 would need; reference is full f32.
    RTOL = ATOL = 3e-2

    # Config 1: downsampling block (in != out, stride 2) -- conv_shortcut path.
    k1, k2, kx1, kx2 = jax.random.split(key, 4)
    in_p, out_p, stride = 4, 8, 2
    params1 = init_params(k1, in_p, out_p)
    x1 = jax.random.normal(kx1, (2, in_p, 16, 16), jnp.float32)
    y1 = wrn_block_forward(x1, params1, in_planes=in_p, out_planes=out_p,
                           stride=stride)
    y1 = jax.block_until_ready(y1)
    ref1 = wrn_block_ref(x1, params1, in_planes=in_p, out_planes=out_p,
                         stride=stride)
    assert y1.shape == (2, out_p, 8, 8)
    assert jnp.allclose(y1, ref1, rtol=RTOL, atol=ATOL), \
        float(jnp.max(jnp.abs(y1 - ref1)))

    # Config 2: identity block (in == out, stride 1) -- plain residual.
    params2 = init_params(k2, 8, 8)
    x2 = jax.random.normal(kx2, (2, 8, 16, 16), jnp.float32)
    y2 = wrn_block_forward(x2, params2, in_planes=8, out_planes=8, stride=1)
    y2 = jax.block_until_ready(y2)
    ref2 = wrn_block_ref(x2, params2, in_planes=8, out_planes=8, stride=1)
    assert y2.shape == (2, 8, 16, 16)
    assert jnp.allclose(y2, ref2, rtol=RTOL, atol=ATOL), \
        float(jnp.max(jnp.abs(y2 - ref2)))

    print("KERNEL_OK")
</pallas_src>

<mosaic_0001>
module attributes {stable_mosaic.version = 11 : i64} {
  func.func @_conv_kernel(%arg0: i32, %arg1: i32, %arg2: memref<4x9x9x128xbf16, #tpu.memory_space<vmem>>, %arg3: memref<1152x128xbf16, #tpu.memory_space<vmem>>, %arg4: memref<1x8x8x128xf32, #tpu.memory_space<vmem>>, %arg5: memref<1x1x2x128xf32, #tpu.memory_space<vmem>>) attributes {dimension_semantics = [#tpu.dimension_semantics<parallel>, #tpu.dimension_semantics<parallel>], iteration_bounds = array<i64: 2, 1>, scalar_prefetch = 0 : i64, scratch_operands = 0 : i64, tpu.core_type = #tpu.core_type<tc>, window_params = [{transform_indices = @transform_0, window_bounds = array<i64: 4, 9, 9, 128>}, {pipeline_mode = #tpu.pipeline_mode<synchronous>, transform_indices = @transform_1, window_bounds = array<i64: 1152, 128>}, {transform_indices = @transform_2, window_bounds = array<i64: 1, 8, 8, 128>}, {transform_indices = @transform_3, window_bounds = array<i64: 1, 1, 2, 128>}]} {
    %c8_i32 = arith.constant 8 : i32
    %0 = arith.muli %arg1, %c8_i32 : i32
    %c0 = arith.constant 0 : index
    %1 = arith.index_cast %0 : i32 to index
    %c0_0 = arith.constant 0 : index
    %c0_1 = arith.constant 0 : index
    %2 = vector.load %arg2[%c0, %1, %c0_0, %c0_1] : memref<4x9x9x128xbf16, #tpu.memory_space<vmem>>, vector<4x9x9x128xbf16>
    %cst = arith.constant 0.000000e+00 : bf16
    %3 = vector.broadcast %cst : bf16 to vector<4x9x9x128xbf16>
    %4 = arith.maximumf %2, %3 : vector<4x9x9x128xbf16>
    %5 = vector.extract_strided_slice %4 {offsets = [0, 0, 0, 0], sizes = [1, 8, 8, 128], strides = [1, 1, 1, 1]} : vector<4x9x9x128xbf16> to vector<1x8x8x128xbf16>
    %6 = vector.shape_cast %5 : vector<1x8x8x128xbf16> to vector<8x8x128xbf16>
    %7 = vector.extract_strided_slice %4 {offsets = [1, 0, 0, 0], sizes = [1, 8, 8, 128], strides = [1, 1, 1, 1]} : vector<4x9x9x128xbf16> to vector<1x8x8x128xbf16>
    %8 = vector.shape_cast %7 : vector<1x8x8x128xbf16> to vector<8x8x128xbf16>
    %9 = vector.extract_strided_slice %4 {offsets = [0, 0, 1, 0], sizes = [1, 8, 8, 128], strides = [1, 1, 1, 1]} : vector<4x9x9x128xbf16> to vector<1x8x8x128xbf16>
    %10 = vector.shape_cast %9 : vector<1x8x8x128xbf16> to vector<8x8x128xbf16>
    %11 = vector.extract_strided_slice %4 {offsets = [2, 0, 0, 0], sizes = [1, 8, 8, 128], strides = [1, 1, 1, 1]} : vector<4x9x9x128xbf16> to vector<1x8x8x128xbf16>
    %12 = vector.shape_cast %11 : vector<1x8x8x128xbf16> to vector<8x8x128xbf16>
    %13 = vector.extract_strided_slice %4 {offsets = [3, 0, 0, 0], sizes = [1, 8, 8, 128], strides = [1, 1, 1, 1]} : vector<4x9x9x128xbf16> to vector<1x8x8x128xbf16>
    %14 = vector.shape_cast %13 : vector<1x8x8x128xbf16> to vector<8x8x128xbf16>
    %15 = vector.extract_strided_slice %4 {offsets = [2, 0, 1, 0], sizes = [1, 8, 8, 128], strides = [1, 1, 1, 1]} : vector<4x9x9x128xbf16> to vector<1x8x8x128xbf16>
    %16 = vector.shape_cast %15 : vector<1x8x8x128xbf16> to vector<8x8x128xbf16>
    %17 = vector.extract_strided_slice %4 {offsets = [0, 1, 0, 0], sizes = [1, 8, 8, 128], strides = [1, 1, 1, 1]} : vector<4x9x9x128xbf16> to vector<1x8x8x128xbf16>
    %18 = vector.shape_cast %17 : vector<1x8x8x128xbf16> to vector<8x8x128xbf16>
    %19 = vector.extract_strided_slice %4 {offsets = [1, 1, 0, 0], sizes = [1, 8, 8, 128], strides = [1, 1, 1, 1]} : vector<4x9x9x128xbf16> to vector<1x8x8x128xbf16>
    %20 = vector.shape_cast %19 : vector<1x8x8x128xbf16> to vector<8x8x128xbf16>
    %21 = vector.extract_strided_slice %4 {offsets = [0, 1, 1, 0], sizes = [1, 8, 8, 128], strides = [1, 1, 1, 1]} : vector<4x9x9x128xbf16> to vector<1x8x8x128xbf16>
    %22 = vector.shape_cast %21 : vector<1x8x8x128xbf16> to vector<8x8x128xbf16>
    %23 = tpu.concatenate %6, %8, %10, %12, %14, %16, %18, %20, %22 in 2 : vector<8x8x128xbf16>, vector<8x8x128xbf16>, vector<8x8x128xbf16>, vector<8x8x128xbf16>, vector<8x8x128xbf16>, vector<8x8x128xbf16>, vector<8x8x128xbf16>, vector<8x8x128xbf16>, vector<8x8x128xbf16> -> vector<8x8x1152xbf16>
    %24 = vector.shape_cast %23 : vector<8x8x1152xbf16> to vector<64x1152xbf16>
    %c0_2 = arith.constant 0 : index
    %c0_3 = arith.constant 0 : index
    %25 = vector.load %arg3[%c0_2, %c0_3] : memref<1152x128xbf16, #tpu.memory_space<vmem>>, vector<1152x128xbf16>
    %cst_4 = arith.constant dense<0.000000e+00> : vector<64x128xf32>
    %26 = tpu.matmul %24, %25, %cst_4 {dimension_numbers = #tpu.dot_dimension_numbers<[1], [0], [0], [1], [0, 0, 1, 1], [], []>} : vector<64x1152xbf16>, vector<1152x128xbf16>, vector<64x128xf32> -> vector<64x128xf32>
    %27 = vector.shape_cast %26 : vector<64x128xf32> to vector<1x8x8x128xf32>
    %c0_5 = arith.constant 0 : index
    %c0_6 = arith.constant 0 : index
    %c0_7 = arith.constant 0 : index
    %c0_8 = arith.constant 0 : index
    %28 = vector.load %arg4[%c0_5, %c0_6, %c0_7, %c0_8] : memref<1x8x8x128xf32, #tpu.memory_space<vmem>>, vector<1x8x8x128xf32>
    tpu.vector_store %arg4[%c0_5, %c0_6, %c0_7, %c0_8], %27 {strides = array<i32>} : memref<1x8x8x128xf32, #tpu.memory_space<vmem>>, vector<1x8x8x128xf32>,
    %cst_9 = arith.constant dense<0.000000e+00> : vector<128xf32>
    %29 = vector.multi_reduction <add>, %26, %cst_9 [0] : vector<64x128xf32> to vector<128xf32>
    %30 = vector.shape_cast %29 : vector<128xf32> to vector<1x128xf32>
    %31 = arith.mulf %26, %26 : vector<64x128xf32>
    %cst_10 = arith.constant dense<0.000000e+00> : vector<128xf32>
    %32 = vector.multi_reduction <add>, %31, %cst_10 [0] : vector<64x128xf32> to vector<128xf32>
    %33 = vector.shape_cast %32 : vector<128xf32> to vector<1x128xf32>
    %34 = tpu.concatenate %30, %33 in 0 : vector<1x128xf32>, vector<1x128xf32> -> vector<2x128xf32>
    %35 = vector.shape_cast %34 : vector<2x128xf32> to vector<1x1x2x128xf32>
    %c0_11 = arith.constant 0 : index
    %c0_12 = arith.constant 0 : index
    %c0_13 = arith.constant 0 : index
    %c0_14 = arith.constant 0 : index
    %36 = vector.load %arg5[%c0_11, %c0_12, %c0_13, %c0_14] : memref<1x1x2x128xf32, #tpu.memory_space<vmem>>, vector<1x1x2x128xf32>
    tpu.vector_store %arg5[%c0_11, %c0_12, %c0_13, %c0_14], %35 {strides = array<i32>} : memref<1x1x2x128xf32, #tpu.memory_space<vmem>>, vector<1x1x2x128xf32>,
    return
  }
  func.func @transform_0(%arg0: i32, %arg1: i32) -> (i32, i32, i32, i32) {
    %c0_i32 = arith.constant 0 : i32
    %c0_i32_0 = arith.constant 0 : i32
    %c0_i32_1 = arith.constant 0 : i32
    %c0_i32_2 = arith.constant 0 : i32
    return %arg0, %c0_i32, %c0_i32_0, %c0_i32_1 : i32, i32, i32, i32
  }
  func.func @transform_1(%arg0: i32, %arg1: i32) -> (i32, i32) {
    %c0_i32 = arith.constant 0 : i32
    %c0_i32_0 = arith.constant 0 : i32
    %c0_i32_1 = arith.constant 0 : i32
    return %c0_i32, %c0_i32_0 : i32, i32
  }
  func.func @transform_2(%arg0: i32, %arg1: i32) -> (i32, i32, i32, i32) {
    %c0_i32 = arith.constant 0 : i32
    %c0_i32_0 = arith.constant 0 : i32
    %c0_i32_1 = arith.constant 0 : i32
    return %arg0, %arg1, %c0_i32, %c0_i32_0 : i32, i32, i32, i32
  }
  func.func @transform_3(%arg0: i32, %arg1: i32) -> (i32, i32, i32, i32) {
    %c0_i32 = arith.constant 0 : i32
    %c0_i32_0 = arith.constant 0 : i32
    %c0_i32_1 = arith.constant 0 : i32
    return %arg0, %arg1, %c0_i32, %c0_i32_0 : i32, i32, i32, i32
  }
}

</mosaic_0001>

<llo_original>
// kernel: tpu_custom_call.1
$region0: #{tpu_custom_call.1}
  #allocation0 [shape = 'u32[]', space=smem, size = 0x4, offset = 0x4, fixed_abs, tag = 'smem constant byte address 0x4 - core index']
  #allocation1 [shape = 'u32[144,128]{1,0:T(1,128)}', space=vmem, size = 0x12000, scoped, tag = 'internal scratch']
  %s0 = inlined_call_operand.vmem [shape: bf16[8,9,9,128], index: 0, kind: input, shape index: {}]
  %s1 = inlined_call_operand.vmem [shape: bf16[1152,128], index: 1, kind: input, shape index: {}]
  %s2 = inlined_call_operand.hbm [shape: f32[2,8,8,128], index: 2, kind: output, shape index: {0}]
  %s3 = inlined_call_operand.hbm [shape: f32[2,1,2,128], index: 3, kind: output, shape index: {1}]
  %4 = xla_tuple %s2, %s3
  %s5 = sld [smem:[#allocation0]]
  $region49: #{tpu_custom_call.1} parent=0
    _
  %s7 = ssub.s32 1, %s5
  %s8 = scalar_select 0, %s7, %s5
  $region1: #{tpu_custom_call.1} parent=0
    #allocation2 [shape = 'u8[65536]{0}', space=vmem, size = 0x10000, scoped, tag = 'output window, operand 0']
    #allocation3 [shape = 's32[2]{0}', space=sflag, size = 0x8, scoped, tag = 'scoped memory for tpu_custom_call.1']
    #allocation4 [shape = 'u8[2048]{0}', space=vmem, size = 0x800, scoped, tag = 'output window, operand 1']
    #allocation5 [shape = 's32[2]{0}', space=sflag, size = 0x8, scoped, tag = 'scoped memory for tpu_custom_call.1']
    %9 = vsyncpa [#allocation3], 0
    %s10 = scalar_lea.sflag [#allocation3], 1
    %11 = vsyncpa %s10, 0
    %12 = vsyncpa [#allocation5], 0
    %s13 = scalar_lea.sflag [#allocation5], 1
    %14 = vsyncpa %s13, 0
    loop: start=0, step=1, limit=4
    $region2: #{tpu_custom_call.1} parent=1 // loop_pre_header
      _
    $region3: #{tpu_custom_call.1} parent=1 // loop_header
      %s16 = sphi 0, %s20
      %p17 = scmp.ge.s32.totalorder %s16, 4
      %s23 = sphi 0, %s35
      %s24 = sphi 0, %s31
      %s25 = sphi 0, %s23
      %s26 = sphi 0, %s24
      %s27 = sphi 0, %s25
      %s28 = sphi 0, %s26
      %s38 = sphi 0, %s40
      %s41 = sphi 0, %s38
      %s42 = sphi 0, %s41
      %s58 = sphi 0, %s42
      %s62 = sphi 0, %s62
      %s64 = sphi 0, %s62
      %s65 = sphi 0, %s64
      %s79 = sphi 0, %s65
      %s87 = sphi 0, %s89
      %s90 = sphi 0, %s87
      %s91 = sphi 0, %s90
      %s107 = sphi 0, %s91
      %s115 = sphi 0, %s117
      %s118 = sphi 0, %s115
      %s119 = sphi 0, %s118
      %s135 = sphi 0, %s119
    $region4: #{tpu_custom_call.1} parent=1 // loop_header_branch
      %19 = sbr.rel (%p17) target = $region8
    $region5: #{tpu_custom_call.1} parent=1 // loop_body
      %s21 = ssub.s32 %s16, 1
      %s22 = ssub.s32 %s16, 2
      %s29 = sadd.s32 1, %s24
      %p30 = scmp.ge.s32.totalorder %s29, 1
      %s31 = scalar_select %p30, 0, %s29
      %s32 = sadd.s32 1, %s23
      %s33 = scalar_select %p30, %s32, %s23
      %p34 = scmp.ge.s32.totalorder %s33, 2
      %s35 = scalar_select %p34, 0, %s33
      %s36 = ssub.s32 %s23, %s35
      %p37 = scmp.eq.s32.totalorder %s36, 0
      %s39 = sadd.s32 %s38, 1
      %s40 = scalar_select %p37, %s38, %s39
      %p43 = pneg %p37
      %p44 = scmp.eq.s32.totalorder %s16, 1
      %p45 = por %p43, %p44
      %p46 = scmp.ne.s32.totalorder %s38, %s41
      %p47 = scmp.eq.s32.totalorder %s16, 0
      %p48 = por %p46, %p47
      %p49 = scmp.ne.s32.totalorder %s38, %s41
      %p50 = scmp.eq.s32.totalorder %s21, 1
      %p51 = por %p49, %p50
      %p52 = scmp.ne.s32.totalorder %s41, %s42
      %p53 = scmp.eq.s32.totalorder %s21, 0
      %p54 = por %p52, %p53
      %p55 = scmp.ne.s32.totalorder %s41, %s42
      %p56 = scmp.eq.s32.totalorder %s22, 1
      %p57 = por %p55, %p56
      %p59 = scmp.ne.s32.totalorder %s42, %s58
      %p60 = scmp.eq.s32.totalorder %s22, 0
      %p61 = por %p59, %p60
      %s63 = sadd.s32 %s62, 1
      %p66 = scmp.eq.s32.totalorder %s16, 1
      %p67 = scmp.ne.s32.totalorder %s62, %s64
      %p68 = scmp.eq.s32.totalorder %s16, 0
      %p69 = por %p67, %p68
      %p70 = scmp.ne.s32.totalorder %s62, %s64
      %p71 = scmp.eq.s32.totalorder %s21, 1
      %p72 = por %p70, %p71
      %p73 = scmp.ne.s32.totalorder %s64, %s65
      %p74 = scmp.eq.s32.totalorder %s21, 0
      %p75 = por %p73, %p74
      %p76 = scmp.ne.s32.totalorder %s64, %s65
      %p77 = scmp.eq.s32.totalorder %s22, 1
      %p78 = por %p76, %p77
      %p80 = scmp.ne.s32.totalorder %s65, %s79
      %p81 = scmp.eq.s32.totalorder %s22, 0
      %p82 = por %p80, %p81
      %s83 = ssub.s32 %s23, %s35
      %s84 = ssub.s32 %s24, %s31
      %s85 = sor.u32 %s83, %s84
      %p86 = scmp.eq.s32.totalorder %s85, 0
      %s88 = sadd.s32 %s87, 1
      %s89 = scalar_select %p86, %s87, %s88
      %p92 = pneg %p86
      %p93 = scmp.eq.s32.totalorder %s16, 1
      %p94 = por %p92, %p93
      %p95 = scmp.ne.s32.totalorder %s87, %s90
      %p96 = scmp.eq.s32.totalorder %s16, 0
      %p97 = por %p95, %p96
      %p98 = scmp.ne.s32.totalorder %s87, %s90
      %p99 = scmp.eq.s32.totalorder %s21, 1
      %p100 = por %p98, %p99
      %p101 = scmp.ne.s32.totalorder %s90, %s91
      %p102 = scmp.eq.s32.totalorder %s21, 0
      %p103 = por %p101, %p102
      %p104 = scmp.ne.s32.totalorder %s90, %s91
      %p105 = scmp.eq.s32.totalorder %s22, 1
      %p106 = por %p104, %p105
      %p108 = scmp.ne.s32.totalorder %s91, %s107
      %p109 = scmp.eq.s32.totalorder %s22, 0
      %p110 = por %p108, %p109
      %s111 = ssub.s32 %s23, %s35
      %s112 = ssub.s32 %s24, %s31
      %s113 = sor.u32 %s111, %s112
      %p114 = scmp.eq.s32.totalorder %s113, 0
      %s116 = sadd.s32 %s115, 1
      %s117 = scalar_select %p114, %s115, %s116
      %p120 = pneg %p114
      %p121 = scmp.eq.s32.totalorder %s16, 1
      %p122 = por %p120, %p121
      %p123 = scmp.ne.s32.totalorder %s115, %s118
      %p124 = scmp.eq.s32.totalorder %s16, 0
      %p125 = por %p123, %p124
      %p126 = scmp.ne.s32.totalorder %s115, %s118
      %p127 = scmp.eq.s32.totalorder %s21, 1
      %p128 = por %p126, %p127
      %p129 = scmp.ne.s32.totalorder %s118, %s119
      %p130 = scmp.eq.s32.totalorder %s21, 0
      %p131 = por %p129, %p130
      %p132 = scmp.ne.s32.totalorder %s118, %s119
      %p133 = scmp.eq.s32.totalorder %s22, 1
      %p134 = por %p132, %p133
      %p136 = scmp.ne.s32.totalorder %s119, %s135
      %p137 = scmp.eq.s32.totalorder %s22, 0
      %p138 = por %p136, %p137
      %p139 = scmp.le.s32.totalorder 1, %s16
      %p140 = scmp.lt.s32.totalorder %s16, 3
      %p141 = pnand %p139, %p140
      %p142 = pneg %p141
      // Predicated region
      $region9: #{tpu_custom_call.1} parent=5 // pred_check
        _
      $region10: #{tpu_custom_call.1} parent=5 // pred_check_branch
        %144 = sbr.rel (%p141) target = $region12
      $region11: #{tpu_custom_call.1} parent=5 // pred_region
        %s145 = ssub.s32 %s16, 1
        // Predicated region
        $region13: #{tpu_custom_call.1} parent=11 // pred_check
          %p146 = pneg %p75
        $region14: #{tpu_custom_call.1} parent=11 // pred_check_branch
          %148 = sbr.rel (%p146) target = $region16
        $region15: #{tpu_custom_call.1} parent=11 // pred_region
          _
        $region16: #{tpu_custom_call.1} parent=11 // pred_fallthru
          _
      $region12: #{tpu_custom_call.1} parent=5 // pred_fallthru
        _
      %p149 = scmp.lt.s32.totalorder %s16, 2
      // Predicated region
      $region17: #{tpu_custom_call.1} parent=5 // pred_check
        %p150 = pneg %p149
      $region18: #{tpu_custom_call.1} parent=5 // pred_check_branch
        %152 = sbr.rel (%p150) target = $region20
      $region19: #{tpu_custom_call.1} parent=5 // pred_region
        // Predicated region
        $region21: #{tpu_custom_call.1} parent=19 // pred_check
          %p153 = pneg %p48
        $region22: #{tpu_custom_call.1} parent=19 // pred_check_branch
          %155 = sbr.rel (%p153) target = $region24
        $region23: #{tpu_custom_call.1} parent=19 // pred_region
          %s156 = smul.u32 4, %s23
          %p157 = scmp.lt.s32.totalorder %s156, 7
          %s158 = scalar_select %p157, %s156, 7
          %s159 = smul.addr %s158, 18
          %s160 = smul.addr %s159, 4
          %s161 = scalar_lea.vmem %s0, %s160
          %s162 = smul.u32 4, %s23
        $region24: #{tpu_custom_call.1} parent=19 // pred_fallthru
          _
      $region20: #{tpu_custom_call.1} parent=5 // pred_fallthru
        _
      %p163 = scmp.le.s32.totalorder 1, %s16
      %p164 = scmp.lt.s32.totalorder %s16, 3
      %p165 = pnand %p163, %p164
      %p166 = pneg %p165
      // Predicated region
      $region25: #{tpu_custom_call.1} parent=5 // pred_check
        _
      $region26: #{tpu_custom_call.1} parent=5 // pred_check_branch
        %168 = sbr.rel (%p165) target = $region28
      $region27: #{tpu_custom_call.1} parent=5 // pred_region
        %s169 = ssub.s32 %s16, 1
        %s170 = smul.u32 4, %s25
        %p171 = scmp.lt.s32.totalorder %s170, 7
        %s172 = scalar_select %p171, %s170, 7
        %s173 = smul.addr %s172, 18
        %s174 = smul.addr %s173, 4
        %s175 = scalar_lea.vmem %s0, %s174
        %p176 = pneg %p54
        %p177 = pneg %p51
        %p178 = pneg %p75
        %p179 = pneg %p72
        %p180 = pneg %p103
        %p181 = pneg %p100
        %s182 = sand.u32 %s90, 1
        %s183 = scalar_lea.sflag [#allocation3], %s182
        %s184 = sand.u32 %s90, 1
        %s185 = smul.addr %s184, 64
        %s186 = scalar_lea.vmem [#allocation2], %s185
        %p187 = pneg %p131
        %p188 = pneg %p128
        %s189 = sand.u32 %s118, 1
        %s190 = scalar_lea.sflag [#allocation5], %s189
        %s191 = sand.u32 %s118, 1
        %s192 = smul.addr %s191, 2
        %s193 = scalar_lea.vmem [#allocation4], %s192
        %s194 = smul.u32 4, %s25
        %p195 = scmp.lt.s32.totalorder %s194, 7
        %s196 = scalar_select %p195, %s194, 7
        %s197 = smul.addr %s196, 18
        %s198 = smul.addr %s197, 4
        %s199 = scalar_lea.vmem %s0, %s198
        %s200 = smul.u32 4, %s25
        %s201 = smul.u32 8, %s26
        %s203 = smul.u32 %s26, 8
        %s204 = smul.u32 %s203, 2
        %s205 = smul.addr %s204, 4
        %s206 = scalar_lea.vmem %s199, %s205
        %v207 = vld [vmem:[%s206] sm:$0xf]
        %v208 = vld [vmem:[%s206 + $0x4] sm:$0x1]
        %v209 = vld [vmem:[%s206 + $0x8] sm:$0xf]
        %v210 = vld [vmem:[%s206 + $0xc] sm:$0x1]
        %v211 = vld [vmem:[%s206 + $0x10] sm:$0xf]
        %v212 = vld [vmem:[%s206 + $0x14] sm:$0x1]
        %v213 = vld [vmem:[%s206 + $0x18] sm:$0xf]
        %v214 = vld [vmem:[%s206 + $0x1c] sm:$0x1]
        %v215 = vld [vmem:[%s206 + $0x20] sm:$0xf]
        %v216 = vld [vmem:[%s206 + $0x24] sm:$0x1]
        %v217 = vld [vmem:[%s206 + $0x28] sm:$0xf]
        %v218 = vld [vmem:[%s206 + $0x2c] sm:$0x1]
        %v219 = vld [vmem:[%s206 + $0x30] sm:$0xf]
        %v220 = vld [vmem:[%s206 + $0x34] sm:$0x1]
        %v221 = vld [vmem:[%s206 + $0x38] sm:$0xf]
        %v222 = vld [vmem:[%s206 + $0x3c] sm:$0x1]
        %v223 = vld [vmem:[%s206 + $0x40] sm:$0xf]
        %v224 = vld [vmem:[%s206 + $0x44] sm:$0x1]
        %v225 = vld [vmem:[%s206 + $0x48] sm:$0xf]
        %v226 = vld [vmem:[%s206 + $0x50] sm:$0xf]
        %v227 = vld [vmem:[%s206 + $0x58] sm:$0xf]
        %v228 = vld [vmem:[%s206 + $0x60] sm:$0xf]
        %v229 = vld [vmem:[%s206 + $0x68] sm:$0xf]
        %v230 = vld [vmem:[%s206 + $0x70] sm:$0xf]
        %v231 = vld [vmem:[%s206 + $0x78] sm:$0xf]
        %v232 = vld [vmem:[%s206 + $0x80] sm:$0xf]
        %v233 = vld [vmem:[%s206 + $0x88] sm:$0xf]
        %v234 = vld [vmem:[%s206 + $0x90] sm:$0xf]
        %v235 = vld [vmem:[%s206 + $0x94] sm:$0x1]
        %v236 = vld [vmem:[%s206 + $0x98] sm:$0xf]
        %v237 = vld [vmem:[%s206 + $0x9c] sm:$0x1]
        %v238 = vld [vmem:[%s206 + $0xa0] sm:$0xf]
        %v239 = vld [vmem:[%s206 + $0xa4] sm:$0x1]
        %v240 = vld [vmem:[%s206 + $0xa8] sm:$0xf]
        %v241 = vld [vmem:[%s206 + $0xac] sm:$0x1]
        %v242 = vld [vmem:[%s206 + $0xb0] sm:$0xf]
        %v243 = vld [vmem:[%s206 + $0xb4] sm:$0x1]
        %v244 = vld [vmem:[%s206 + $0xb8] sm:$0xf]
        %v245 = vld [vmem:[%s206 + $0xbc] sm:$0x1]
        %v246 = vld [vmem:[%s206 + $0xc0] sm:$0xf]
        %v247 = vld [vmem:[%s206 + $0xc4] sm:$0x1]
        %v248 = vld [vmem:[%s206 + $0xc8] sm:$0xf]
        %v249 = vld [vmem:[%s206 + $0xcc] sm:$0x1]
        %v250 = vld [vmem:[%s206 + $0xd8] sm:$0xf]
        %v251 = vld [vmem:[%s206 + $0xe0] sm:$0xf]
        %v252 = vld [vmem:[%s206 + $0xe8] sm:$0xf]
        %v253 = vld [vmem:[%s206 + $0xf0] sm:$0xf]
        %v254 = vld [vmem:[%s206 + $0xf8] sm:$0xf]
        %v255 = vld [vmem:[%s206 + $0x100] sm:$0xf]
        %v256 = vld [vmem:[%s206 + $0x108] sm:$0xf]
        %v257 = vld [vmem:[%s206 + $0x110] sm:$0xf]
        %v258 = vmax.bf16 %v207, 0
        %v259 = vmax.bf16 %v208, 0
        %v260 = vmax.bf16 %v209, 0
        %v261 = vmax.bf16 %v210, 0
        %v262 = vmax.bf16 %v211, 0
        %v263 = vmax.bf16 %v212, 0
        %v264 = vmax.bf16 %v213, 0
        %v265 = vmax.bf16 %v214, 0
        %v266 = vmax.bf16 %v215, 0
        %v267 = vmax.bf16 %v216, 0
        %v268 = vmax.bf16 %v217, 0
        %v269 = vmax.bf16 %v218, 0
        %v270 = vmax.bf16 %v219, 0
        %v271 = vmax.bf16 %v220, 0
        %v272 = vmax.bf16 %v221, 0
        %v273 = vmax.bf16 %v222, 0
        %v274 = vmax.bf16 %v223, 0
        %v275 = vmax.bf16 %v224, 0
        %v276 = vmax.bf16 %v225, 0
        %v277 = vmax.bf16 %v226, 0
        %v278 = vmax.bf16 %v227, 0
        %v279 = vmax.bf16 %v228, 0
        %v280 = vmax.bf16 %v229, 0
        %v281 = vmax.bf16 %v230, 0
        %v282 = vmax.bf16 %v231, 0
        %v283 = vmax.bf16 %v232, 0
        %v284 = vmax.bf16 %v233, 0
        %v285 = vmax.bf16 %v234, 0
        %v286 = vmax.bf16 %v235, 0
        %v287 = vmax.bf16 %v236, 0
        %v288 = vmax.bf16 %v237, 0
        %v289 = vmax.bf16 %v238, 0
        %v290 = vmax.bf16 %v239, 0
        %v291 = vmax.bf16 %v240, 0
        %v292 = vmax.bf16 %v241, 0
        %v293 = vmax.bf16 %v242, 0
        %v294 = vmax.bf16 %v243, 0
        %v295 = vmax.bf16 %v244, 0
        %v296 = vmax.bf16 %v245, 0
        %v297 = vmax.bf16 %v246, 0
        %v298 = vmax.bf16 %v247, 0
        %v299 = vmax.bf16 %v248, 0
        %v300 = vmax.bf16 %v249, 0
        %v301 = vmax.bf16 %v250, 0
        %v302 = vmax.bf16 %v251, 0
        %v303 = vmax.bf16 %v252, 0
        %v304 = vmax.bf16 %v253, 0
        %v305 = vmax.bf16 %v254, 0
        %v306 = vmax.bf16 %v255, 0
        %v307 = vmax.bf16 %v256, 0
        %v308 = vmax.bf16 %v257, 0
        %v325 = vunpack.c.l.b16 %v258
        %v326 = vunpack.c.l.b16 %v259
        %v327 = vunpack.c.l.b16 %v260
        %v328 = vunpack.c.l.b16 %v261
        %v329 = vunpack.c.l.b16 %v262
        %v330 = vunpack.c.l.b16 %v263
        %v331 = vunpack.c.l.b16 %v264
        %v332 = vunpack.c.l.b16 %v265
        %v333 = vunpack.c.l.b16 %v266
        %v334 = vunpack.c.l.b16 %v267
        %v335 = vunpack.c.l.b16 %v268
        %v336 = vunpack.c.l.b16 %v269
        %v337 = vunpack.c.l.b16 %v270
        %v338 = vunpack.c.l.b16 %v271
        %v339 = vunpack.c.l.b16 %v272
        %v340 = vunpack.c.l.b16 %v273
        %v341 = vpack.c.b16 %v326, %v325
        %v342 = vpack.c.b16 %v328, %v327
        %v343 = vpack.c.b16 %v330, %v329
        %v344 = vpack.c.b16 %v332, %v331
        %v345 = vpack.c.b16 %v334, %v333
        %v346 = vpack.c.b16 %v336, %v335
        %v347 = vpack.c.b16 %v338, %v337
        %v348 = vpack.c.b16 %v340, %v339
        %v350 = vshrl.u32 %v341, 16
        %v352 = vshll.u32 %v341, 16
        %v354 = vrot.slane %v352, 1
        %v355 = vor.u32 %v350, %v354
        %v357 = vshrl.u32 %v342, 16
        %v359 = vshll.u32 %v342, 16
        %v361 = vrot.slane %v359, 1
        %v362 = vor.u32 %v357, %v361
        %v364 = vshrl.u32 %v343, 16
        %v366 = vshll.u32 %v343, 16
        %v368 = vrot.slane %v366, 1
        %v369 = vor.u32 %v364, %v368
        %v371 = vshrl.u32 %v344, 16
        %v373 = vshll.u32 %v344, 16
        %v375 = vrot.slane %v373, 1
        %v376 = vor.u32 %v371, %v375
        %v378 = vshrl.u32 %v345, 16
        %v380 = vshll.u32 %v345, 16
        %v382 = vrot.slane %v380, 1
        %v383 = vor.u32 %v378, %v382
        %v385 = vshrl.u32 %v346, 16
        %v387 = vshll.u32 %v346, 16
        %v389 = vrot.slane %v387, 1
        %v390 = vor.u32 %v385, %v389
        %v392 = vshrl.u32 %v347, 16
        %v394 = vshll.u32 %v347, 16
        %v396 = vrot.slane %v394, 1
        %v397 = vor.u32 %v392, %v396
        %v399 = vshrl.u32 %v348, 16
        %v401 = vshll.u32 %v348, 16
        %v403 = vrot.slane %v401, 1
        %v404 = vor.u32 %v399, %v403
        %v421 = vunpack.c.l.b16 %v285
        %v422 = vunpack.c.l.b16 %v286
        %v423 = vunpack.c.l.b16 %v287
        %v424 = vunpack.c.l.b16 %v288
        %v425 = vunpack.c.l.b16 %v289
        %v426 = vunpack.c.l.b16 %v290
        %v427 = vunpack.c.l.b16 %v291
        %v428 = vunpack.c.l.b16 %v292
        %v429 = vunpack.c.l.b16 %v293
        %v430 = vunpack.c.l.b16 %v294
        %v431 = vunpack.c.l.b16 %v295
        %v432 = vunpack.c.l.b16 %v296
        %v433 = vunpack.c.l.b16 %v297
        %v434 = vunpack.c.l.b16 %v298
        %v435 = vunpack.c.l.b16 %v299
        %v436 = vunpack.c.l.b16 %v300
        %v437 = vpack.c.b16 %v422, %v421
        %v438 = vpack.c.b16 %v424, %v423
        %v439 = vpack.c.b16 %v426, %v425
        %v440 = vpack.c.b16 %v428, %v427
        %v441 = vpack.c.b16 %v430, %v429
        %v442 = vpack.c.b16 %v432, %v431
        %v443 = vpack.c.b16 %v434, %v433
        %v444 = vpack.c.b16 %v436, %v435
        %v446 = vshrl.u32 %v437, 16
        %v448 = vshll.u32 %v437, 16
        %v450 = vrot.slane %v448, 1
        %v451 = vor.u32 %v446, %v450
        %v453 = vshrl.u32 %v438, 16
        %v455 = vshll.u32 %v438, 16
        %v457 = vrot.slane %v455, 1
        %v458 = vor.u32 %v453, %v457
        %v460 = vshrl.u32 %v439, 16
        %v462 = vshll.u32 %v439, 16
        %v464 = vrot.slane %v462, 1
        %v465 = vor.u32 %v460, %v464
        %v467 = vshrl.u32 %v440, 16
        %v469 = vshll.u32 %v440, 16
        %v471 = vrot.slane %v469, 1
        %v472 = vor.u32 %v467, %v471
        %v474 = vshrl.u32 %v441, 16
        %v476 = vshll.u32 %v441, 16
        %v478 = vrot.slane %v476, 1
        %v479 = vor.u32 %v474, %v478
        %v481 = vshrl.u32 %v442, 16
        %v483 = vshll.u32 %v442, 16
        %v485 = vrot.slane %v483, 1
        %v486 = vor.u32 %v481, %v485
        %v488 = vshrl.u32 %v443, 16
        %v490 = vshll.u32 %v443, 16
        %v492 = vrot.slane %v490, 1
        %v493 = vor.u32 %v488, %v492
        %v495 = vshrl.u32 %v444, 16
        %v497 = vshll.u32 %v444, 16
        %v499 = vrot.slane %v497, 1
        %v500 = vor.u32 %v495, %v499
        %v503 = vunpack.c.l.b16 %v274
        %v504 = vunpack.c.l.b16 %v275
        %v505 = vpack.c.b16 %v504, %v503
        %v507 = vshrl.u32 %v505, 16
        %v509 = vshll.u32 %v505, 16
        %v511 = vrot.slane %v509, 1
        %v512 = vor.u32 %v507, %v511
        %v530 = vunpack.c.l.b16 %v276
        %v531 = vunpack.c.l.b16 %v355
        %v532 = vunpack.c.l.b16 %v301
        %v533 = vunpack.c.l.b16 %v451
        %v534 = vunpack.c.l.b16 %v277
        %v535 = vunpack.c.l.b16 %v362
        %v536 = vunpack.c.l.b16 %v302
        %v537 = vunpack.c.l.b16 %v458
        %v538 = vunpack.c.l.b16 %v278
        %v539 = vunpack.c.l.b16 %v369
        %v540 = vunpack.c.l.b16 %v303
        %v541 = vunpack.c.l.b16 %v465
        %v542 = vunpack.c.l.b16 %v279
        %v543 = vunpack.c.l.b16 %v376
        %v544 = vunpack.c.l.b16 %v304
        %v545 = vunpack.c.l.b16 %v472
        %v546 = vunpack.c.l.b16 %v280
        %v547 = vunpack.c.l.b16 %v383
        %v548 = vunpack.c.l.b16 %v305
        %v549 = vunpack.c.l.b16 %v479
        %v550 = vunpack.c.l.b16 %v281
        %v551 = vunpack.c.l.b16 %v390
        %v552 = vunpack.c.l.b16 %v306
        %v553 = vunpack.c.l.b16 %v486
        %v554 = vunpack.c.l.b16 %v282
        %v555 = vunpack.c.l.b16 %v397
        %v556 = vunpack.c.l.b16 %v307
        %v557 = vunpack.c.l.b16 %v493
        %v558 = vunpack.c.l.b16 %v283
        %v559 = vunpack.c.l.b16 %v404
        %v560 = vunpack.c.l.b16 %v308
        %v561 = vunpack.c.l.b16 %v500
        %v562 = vunpack.c.l.b16 %v284
        %v563 = vunpack.c.l.b16 %v512
        %v564 = vld [vmem:[%s1] sm:$0xf]
        %v565 = vld [vmem:[%s1 + $0x4] sm:$0xf]
        %v566 = vld [vmem:[%s1 + $0x8] sm:$0xf]
        %v567 = vld [vmem:[%s1 + $0xc] sm:$0xf]
        %v568 = vld [vmem:[%s1 + $0x10] sm:$0xf]
        %v569 = vld [vmem:[%s1 + $0x14] sm:$0xf]
        %v570 = vld [vmem:[%s1 + $0x18] sm:$0xf]
        %v571 = vld [vmem:[%s1 + $0x1c] sm:$0xf]
        %v572 = vld [vmem:[%s1 + $0x20] sm:$0xf]
        %v573 = vld [vmem:[%s1 + $0x24] sm:$0xf]
        %v574 = vld [vmem:[%s1 + $0x28] sm:$0xf]
        %v575 = vld [vmem:[%s1 + $0x2c] sm:$0xf]
        %v576 = vld [vmem:[%s1 + $0x30] sm:$0xf]
        %v577 = vld [vmem:[%s1 + $0x34] sm:$0xf]
        %v578 = vld [vmem:[%s1 + $0x38] sm:$0xf]
        %v579 = vld [vmem:[%s1 + $0x3c] sm:$0xf]
        %v580 = vld [vmem:[%s1 + $0x40] sm:$0xf]
        %v581 = vld [vmem:[%s1 + $0x44] sm:$0xf]
        %v582 = vld [vmem:[%s1 + $0x48] sm:$0xf]
        %v583 = vld [vmem:[%s1 + $0x4c] sm:$0xf]
        %v584 = vld [vmem:[%s1 + $0x50] sm:$0xf]
        %v585 = vld [vmem:[%s1 + $0x54] sm:$0xf]
        %v586 = vld [vmem:[%s1 + $0x58] sm:$0xf]
        %v587 = vld [vmem:[%s1 + $0x5c] sm:$0xf]
        %v588 = vld [vmem:[%s1 + $0x60] sm:$0xf]
        %v589 = vld [vmem:[%s1 + $0x64] sm:$0xf]
        %v590 = vld [vmem:[%s1 + $0x68] sm:$0xf]
        %v591 = vld [vmem:[%s1 + $0x6c] sm:$0xf]
        %v592 = vld [vmem:[%s1 + $0x70] sm:$0xf]
        %v593 = vld [vmem:[%s1 + $0x74] sm:$0xf]
        %v594 = vld [vmem:[%s1 + $0x78] sm:$0xf]
        %v595 = vld [vmem:[%s1 + $0x7c] sm:$0xf]
        %v596 = vld [vmem:[%s1 + $0x80] sm:$0xf]
        %v597 = vld [vmem:[%s1 + $0x84] sm:$0xf]
        %v598 = vld [vmem:[%s1 + $0x88] sm:$0xf]
        %v599 = vld [vmem:[%s1 + $0x8c] sm:$0xf]
        %v600 = vld [vmem:[%s1 + $0x90] sm:$0xf]
        %v601 = vld [vmem:[%s1 + $0x94] sm:$0xf]
        %v602 = vld [vmem:[%s1 + $0x98] sm:$0xf]
        %v603 = vld [vmem:[%s1 + $0x9c] sm:$0xf]
        %v604 = vld [vmem:[%s1 + $0xa0] sm:$0xf]
        %v605 = vld [vmem:[%s1 + $0xa4] sm:$0xf]
        %v606 = vld [vmem:[%s1 + $0xa8] sm:$0xf]
        %v607 = vld [vmem:[%s1 + $0xac] sm:$0xf]
        %v608 = vld [vmem:[%s1 + $0xb0] sm:$0xf]
        %v609 = vld [vmem:[%s1 + $0xb4] sm:$0xf]
        %v610 = vld [vmem:[%s1 + $0xb8] sm:$0xf]
        %v611 = vld [vmem:[%s1 + $0xbc] sm:$0xf]
        %v612 = vld [vmem:[%s1 + $0xc0] sm:$0xf]
        %v613 = vld [vmem:[%s1 + $0xc4] sm:$0xf]
        %v614 = vld [vmem:[%s1 + $0xc8] sm:$0xf]
        %v615 = vld [vmem:[%s1 + $0xcc] sm:$0xf]
        %v616 = vld [vmem:[%s1 + $0xd0] sm:$0xf]
        %v617 = vld [vmem:[%s1 + $0xd4] sm:$0xf]
        %v618 = vld [vmem:[%s1 + $0xd8] sm:$0xf]
        %v619 = vld [vmem:[%s1 + $0xdc] sm:$0xf]
        %v620 = vld [vmem:[%s1 + $0xe0] sm:$0xf]
        %v621 = vld [vmem:[%s1 + $0xe4] sm:$0xf]
        %v622 = vld [vmem:[%s1 + $0xe8] sm:$0xf]
        %v623 = vld [vmem:[%s1 + $0xec] sm:$0xf]
        %v624 = vld [vmem:[%s1 + $0xf0] sm:$0xf]
        %v625 = vld [vmem:[%s1 + $0xf4] sm:$0xf]
        %v626 = vld [vmem:[%s1 + $0xf8] sm:$0xf]
        %v627 = vld [vmem:[%s1 + $0xfc] sm:$0xf]
        %v628 = vld [vmem:[%s1 + $0x100] sm:$0xf]
        %v629 = vld [vmem:[%s1 + $0x104] sm:$0xf]
        %v630 = vld [vmem:[%s1 + $0x108] sm:$0xf]
        %v631 = vld [vmem:[%s1 + $0x10c] sm:$0xf]
        %v632 = vld [vmem:[%s1 + $0x110] sm:$0xf]
        %v633 = vld [vmem:[%s1 + $0x114] sm:$0xf]
        %v634 = vld [vmem:[%s1 + $0x118] sm:$0xf]
        %v635 = vld [vmem:[%s1 + $0x11c] sm:$0xf]
        %v636 = vld [vmem:[%s1 + $0x120] sm:$0xf]
        %v637 = vld [vmem:[%s1 + $0x124] sm:$0xf]
        %v638 = vld [vmem:[%s1 + $0x128] sm:$0xf]
        %v639 = vld [vmem:[%s1 + $0x12c] sm:$0xf]
        %v640 = vld [vmem:[%s1 + $0x130] sm:$0xf]
        %v641 = vld [vmem:[%s1 + $0x134] sm:$0xf]
        %v642 = vld [vmem:[%s1 + $0x138] sm:$0xf]
        %v643 = vld [vmem:[%s1 + $0x13c] sm:$0xf]
        %v644 = vld [vmem:[%s1 + $0x140] sm:$0xf]
        %v645 = vld [vmem:[%s1 + $0x144] sm:$0xf]
        %v646 = vld [vmem:[%s1 + $0x148] sm:$0xf]
        %v647 = vld [vmem:[%s1 + $0x14c] sm:$0xf]
        %v648 = vld [vmem:[%s1 + $0x150] sm:$0xf]
        %v649 = vld [vmem:[%s1 + $0x154] sm:$0xf]
        %v650 = vld [vmem:[%s1 + $0x158] sm:$0xf]
        %v651 = vld [vmem:[%s1 + $0x15c] sm:$0xf]
        %v652 = vld [vmem:[%s1 + $0x160] sm:$0xf]
        %v653 = vld [vmem:[%s1 + $0x164] sm:$0xf]
        %v654 = vld [vmem:[%s1 + $0x168] sm:$0xf]
        %v655 = vld [vmem:[%s1 + $0x16c] sm:$0xf]
        %v656 = vld [vmem:[%s1 + $0x170] sm:$0xf]
        %v657 = vld [vmem:[%s1 + $0x174] sm:$0xf]
        %v658 = vld [vmem:[%s1 + $0x178] sm:$0xf]
        %v659 = vld [vmem:[%s1 + $0x17c] sm:$0xf]
        %v660 = vld [vmem:[%s1 + $0x180] sm:$0xf]
        %v661 = vld [vmem:[%s1 + $0x184] sm:$0xf]
        %v662 = vld [vmem:[%s1 + $0x188] sm:$0xf]
        %v663 = vld [vmem:[%s1 + $0x18c] sm:$0xf]
        %v664 = vld [vmem:[%s1 + $0x190] sm:$0xf]
        %v665 = vld [vmem:[%s1 + $0x194] sm:$0xf]
        %v666 = vld [vmem:[%s1 + $0x198] sm:$0xf]
        %v667 = vld [vmem:[%s1 + $0x19c] sm:$0xf]
        %v668 = vld [vmem:[%s1 + $0x1a0] sm:$0xf]
        %v669 = vld [vmem:[%s1 + $0x1a4] sm:$0xf]
        %v670 = vld [vmem:[%s1 + $0x1a8] sm:$0xf]
        %v671 = vld [vmem:[%s1 + $0x1ac] sm:$0xf]
        %v672 = vld [vmem:[%s1 + $0x1b0] sm:$0xf]
        %v673 = vld [vmem:[%s1 + $0x1b4] sm:$0xf]
        %v674 = vld [vmem:[%s1 + $0x1b8] sm:$0xf]
        %v675 = vld [vmem:[%s1 + $0x1bc] sm:$0xf]
        %v676 = vld [vmem:[%s1 + $0x1c0] sm:$0xf]
        %v677 = vld [vmem:[%s1 + $0x1c4] sm:$0xf]
        %v678 = vld [vmem:[%s1 + $0x1c8] sm:$0xf]
        %v679 = vld [vmem:[%s1 + $0x1cc] sm:$0xf]
        %v680 = vld [vmem:[%s1 + $0x1d0] sm:$0xf]
        %v681 = vld [vmem:[%s1 + $0x1d4] sm:$0xf]
        %v682 = vld [vmem:[%s1 + $0x1d8] sm:$0xf]
        %v683 = vld [vmem:[%s1 + $0x1dc] sm:$0xf]
        %v684 = vld [vmem:[%s1 + $0x1e0] sm:$0xf]
        %v685 = vld [vmem:[%s1 + $0x1e4] sm:$0xf]
        %v686 = vld [vmem:[%s1 + $0x1e8] sm:$0xf]
        %v687 = vld [vmem:[%s1 + $0x1ec] sm:$0xf]
        %v688 = vld [vmem:[%s1 + $0x1f0] sm:$0xf]
        %v689 = vld [vmem:[%s1 + $0x1f4] sm:$0xf]
        %v690 = vld [vmem:[%s1 + $0x1f8] sm:$0xf]
        %v691 = vld [vmem:[%s1 + $0x1fc] sm:$0xf]
        %v692 = vld [vmem:[%s1 + $0x200] sm:$0xf]
        %v693 = vld [vmem:[%s1 + $0x204] sm:$0xf]
        %v694 = vld [vmem:[%s1 + $0x208] sm:$0xf]
        %v695 = vld [vmem:[%s1 + $0x20c] sm:$0xf]
        %v696 = vld [vmem:[%s1 + $0x210] sm:$0xf]
        %v697 = vld [vmem:[%s1 + $0x214] sm:$0xf]
        %v698 = vld [vmem:[%s1 + $0x218] sm:$0xf]
        %v699 = vld [vmem:[%s1 + $0x21c] sm:$0xf]
        %v700 = vld [vmem:[%s1 + $0x220] sm:$0xf]
        %v701 = vld [vmem:[%s1 + $0x224] sm:$0xf]
        %v702 = vld [vmem:[%s1 + $0x228] sm:$0xf]
        %v703 = vld [vmem:[%s1 + $0x22c] sm:$0xf]
        %v704 = vld [vmem:[%s1 + $0x230] sm:$0xf]
        %v705 = vld [vmem:[%s1 + $0x234] sm:$0xf]
        %v706 = vld [vmem:[%s1 + $0x238] sm:$0xf]
        %v707 = vld [vmem:[%s1 + $0x23c] sm:$0xf]
        %v708 = vpack.c.b16 %v327, %v325
        %v709 = vpack.c.b16 %v534, %v530
        %v710 = vpack.c.b16 %v535, %v531
        %v711 = vpack.c.b16 %v423, %v421
        %v712 = vpack.c.b16 %v536, %v532
        %v713 = vpack.c.b16 %v537, %v533
        %v714 = vpack.c.b16 %v329, %v327
        %v715 = vpack.c.b16 %v538, %v534
        %v716 = vpack.c.b16 %v539, %v535
        %v717 = vpack.c.b16 %v331, %v329
        %v718 = vpack.c.b16 %v542, %v538
        %v719 = vpack.c.b16 %v543, %v539
        %v720 = vpack.c.b16 %v427, %v425
        %v721 = vpack.c.b16 %v544, %v540
        %v722 = vpack.c.b16 %v545, %v541
        %v723 = vpack.c.b16 %v333, %v331
        %v724 = vpack.c.b16 %v546, %v542
        %v725 = vpack.c.b16 %v547, %v543
        %v726 = vpack.c.b16 %v335, %v333
        %v727 = vpack.c.b16 %v550, %v546
        %v728 = vpack.c.b16 %v551, %v547
        %v729 = vpack.c.b16 %v431, %v429
        %v730 = vpack.c.b16 %v552, %v548
        %v731 = vpack.c.b16 %v553, %v549
        %v732 = vpack.c.b16 %v337, %v335
        %v733 = vpack.c.b16 %v554, %v550
        %v734 = vpack.c.b16 %v555, %v551
        %v735 = vpack.c.b16 %v339, %v337
        %v736 = vpack.c.b16 %v558, %v554
        %v737 = vpack.c.b16 %v559, %v555
        %v738 = vpack.c.b16 %v435, %v433
        %v739 = vpack.c.b16 %v560, %v556
        %v740 = vpack.c.b16 %v561, %v557
        %v741 = vpack.c.b16 %v503, %v339
        %v742 = vpack.c.b16 %v562, %v558
        %v743 = vpack.c.b16 %v563, %v559
        %v924 = vunpack.c.l.b16 %v564
        %v925 = vunpack.c.l.b16 %v565
        %v926 = vunpack.c.l.b16 %v566
        %v927 = vunpack.c.l.b16 %v567
        %v928 = vunpack.c.l.b16 %v568
        %v929 = vunpack.c.l.b16 %v569
        %v930 = vunpack.c.l.b16 %v570
        %v931 = vunpack.c.l.b16 %v571
        %v932 = vunpack.c.l.b16 %v572
        %v933 = vunpack.c.l.b16 %v573
        %v934 = vunpack.c.l.b16 %v574
        %v935 = vunpack.c.l.b16 %v575
        %v936 = vunpack.c.l.b16 %v576
        %v937 = vunpack.c.l.b16 %v577
        %v938 = vunpack.c.l.b16 %v578
        %v939 = vunpack.c.l.b16 %v579
        %v940 = vunpack.c.l.b16 %v580
        %v941 = vunpack.c.l.b16 %v581
        %v942 = vunpack.c.l.b16 %v582
        %v943 = vunpack.c.l.b16 %v583
        %v944 = vunpack.c.l.b16 %v584
        %v945 = vunpack.c.l.b16 %v585
        %v946 = vunpack.c.l.b16 %v586
        %v947 = vunpack.c.l.b16 %v587
        %v948 = vunpack.c.l.b16 %v588
        %v949 = vunpack.c.l.b16 %v589
        %v950 = vunpack.c.l.b16 %v590
        %v951 = vunpack.c.l.b16 %v591
        %v952 = vunpack.c.l.b16 %v592
        %v953 = vunpack.c.l.b16 %v593
        %v954 = vunpack.c.l.b16 %v594
        %v955 = vunpack.c.l.b16 %v595
        %v956 = vunpack.c.l.b16 %v596
        %v957 = vunpack.c.l.b16 %v597
        %v958 = vunpack.c.l.b16 %v598
        %v959 = vunpack.c.l.b16 %v599
        %v960 = vunpack.c.l.b16 %v600
        %v961 = vunpack.c.l.b16 %v601
        %v962 = vunpack.c.l.b16 %v602
        %v963 = vunpack.c.l.b16 %v603
        %v964 = vunpack.c.l.b16 %v604
        %v965 = vunpack.c.l.b16 %v605
        %v966 = vunpack.c.l.b16 %v606
        %v967 = vunpack.c.l.b16 %v607
        %v968 = vunpack.c.l.b16 %v608
        %v969 = vunpack.c.l.b16 %v609
        %v970 = vunpack.c.l.b16 %v610
        %v971 = vunpack.c.l.b16 %v611
        %v972 = vunpack.c.l.b16 %v612
        %v973 = vunpack.c.l.b16 %v613
        %v974 = vunpack.c.l.b16 %v614
        %v975 = vunpack.c.l.b16 %v615
        %v976 = vunpack.c.l.b16 %v616
        %v977 = vunpack.c.l.b16 %v617
        %v978 = vunpack.c.l.b16 %v618
        %v979 = vunpack.c.l.b16 %v619
        %v980 = vunpack.c.l.b16 %v620
        %v981 = vunpack.c.l.b16 %v621
        %v982 = vunpack.c.l.b16 %v622
        %v983 = vunpack.c.l.b16 %v623
        %v984 = vunpack.c.l.b16 %v624
        %v985 = vunpack.c.l.b16 %v625
        %v986 = vunpack.c.l.b16 %v626
        %v987 = vunpack.c.l.b16 %v627
        %v988 = vunpack.c.l.b16 %v628
        %v989 = vunpack.c.l.b16 %v629
        %v990 = vunpack.c.l.b16 %v630
        %v991 = vunpack.c.l.b16 %v631
        %v992 = vunpack.c.l.b16 %v632
        %v993 = vunpack.c.l.b16 %v633
        %v994 = vunpack.c.l.b16 %v634
        %v995 = vunpack.c.l.b16 %v635
        %v996 = vunpack.c.l.b16 %v636
        %v997 = vunpack.c.l.b16 %v637
        %v998 = vunpack.c.l.b16 %v638
        %v999 = vunpack.c.l.b16 %v639
        %v1000 = vunpack.c.l.b16 %v640
        %v1001 = vunpack.c.l.b16 %v641
        %v1002 = vunpack.c.l.b16 %v642
        %v1003 = vunpack.c.l.b16 %v643
        %v1004 = vunpack.c.l.b16 %v644
        %v1005 = vunpack.c.l.b16 %v645
        %v1006 = vunpack.c.l.b16 %v646
        %v1007 = vunpack.c.l.b16 %v647
        %v1008 = vunpack.c.l.b16 %v648
        %v1009 = vunpack.c.l.b16 %v649
        %v1010 = vunpack.c.l.b16 %v650
        %v1011 = vunpack.c.l.b16 %v651
        %v1012 = vunpack.c.l.b16 %v652
        %v1013 = vunpack.c.l.b16 %v653
        %v1014 = vunpack.c.l.b16 %v654
        %v1015 = vunpack.c.l.b16 %v655
        %v1016 = vunpack.c.l.b16 %v656
        %v1017 = vunpack.c.l.b16 %v657
        %v1018 = vunpack.c.l.b16 %v658
        %v1019 = vunpack.c.l.b16 %v659
        %v1020 = vunpack.c.l.b16 %v660
        %v1021 = vunpack.c.l.b16 %v661
        %v1022 = vunpack.c.l.b16 %v662
        %v1023 = vunpack.c.l.b16 %v663
        %v1024 = vunpack.c.l.b16 %v664
        %v1025 = vunpack.c.l.b16 %v665
        %v1026 = vunpack.c.l.b16 %v666
        %v1027 = vunpack.c.l.b16 %v667
        %v1028 = vunpack.c.l.b16 %v668
        %v1029 = vunpack.c.l.b16 %v669
        %v1030 = vunpack.c.l.b16 %v670
        %v1031 = vunpack.c.l.b16 %v671
        %v1032 = vunpack.c.l.b16 %v672
        %v1033 = vunpack.c.l.b16 %v673
        %v1034 = vunpack.c.l.b16 %v674
        %v1035 = vunpack.c.l.b16 %v675
        %v1036 = vunpack.c.l.b16 %v676
        %v1037 = vunpack.c.l.b16 %v677
        %v1038 = vunpack.c.l.b16 %v678
        %v1039 = vunpack.c.l.b16 %v679
        %v1040 = vunpack.c.l.b16 %v680
        %v1041 = vunpack.c.l.b16 %v681
        %v1042 = vunpack.c.l.b16 %v682
        %v1043 = vunpack.c.l.b16 %v683
        %v1044 = vunpack.c.l.b16 %v684
        %v1045 = vunpack.c.l.b16 %v685
        %v1046 = vunpack.c.l.b16 %v686
        %v1047 = vunpack.c.l.b16 %v687
        %v1048 = vunpack.c.l.b16 %v688
        %v1049 = vunpack.c.l.b16 %v689
        %v1050 = vunpack.c.l.b16 %v690
        %v1051 = vunpack.c.l.b16 %v691
        %v1052 = vunpack.c.l.b16 %v692
        %v1053 = vunpack.c.l.b16 %v693
        %v1054 = vunpack.c.l.b16 %v694
        %v1055 = vunpack.c.l.b16 %v695
        %v1056 = vunpack.c.l.b16 %v696
        %v1057 = vunpack.c.l.b16 %v697
        %v1058 = vunpack.c.l.b16 %v698
        %v1059 = vunpack.c.l.b16 %v699
        %v1060 = vunpack.c.l.b16 %v700
        %v1061 = vunpack.c.l.b16 %v701
        %v1062 = vunpack.c.l.b16 %v702
        %v1063 = vunpack.c.l.b16 %v703
        %v1064 = vunpack.c.l.b16 %v704
        %v1065 = vunpack.c.l.b16 %v705
        %v1066 = vunpack.c.l.b16 %v706
        %v1067 = vunpack.c.l.b16 %v707
        %v1068 = vpack.c.b16 %v925, %v924
        %v1069 = vpack.c.b16 %v927, %v926
        %v1070 = vpack.c.b16 %v929, %v928
        %v1071 = vpack.c.b16 %v931, %v930
        %v1072 = vpack.c.b16 %v933, %v932
        %v1073 = vpack.c.b16 %v935, %v934
        %v1074 = vpack.c.b16 %v937, %v936
        %v1075 = vpack.c.b16 %v939, %v938
        %v1076 = vpack.c.b16 %v941, %v940
        %v1077 = vpack.c.b16 %v943, %v942
        %v1078 = vpack.c.b16 %v945, %v944
        %v1079 = vpack.c.b16 %v947, %v946
        %v1080 = vpack.c.b16 %v949, %v948
        %v1081 = vpack.c.b16 %v951, %v950
        %v1082 = vpack.c.b16 %v953, %v952
        %v1083 = vpack.c.b16 %v955, %v954
        %v1084 = vpack.c.b16 %v957, %v956
        %v1085 = vpack.c.b16 %v959, %v958
        %v1086 = vpack.c.b16 %v961, %v960
        %v1087 = vpack.c.b16 %v963, %v962
        %v1088 = vpack.c.b16 %v965, %v964
        %v1089 = vpack.c.b16 %v967, %v966
        %v1090 = vpack.c.b16 %v969, %v968
        %v1091 = vpack.c.b16 %v971, %v970
        %v1092 = vpack.c.b16 %v973, %v972
        %v1093 = vpack.c.b16 %v975, %v974
        %v1094 = vpack.c.b16 %v977, %v976
        %v1095 = vpack.c.b16 %v979, %v978
        %v1096 = vpack.c.b16 %v981, %v980
        %v1097 = vpack.c.b16 %v983, %v982
        %v1098 = vpack.c.b16 %v985, %v984
        %v1099 = vpack.c.b16 %v987, %v986
        %v1100 = vpack.c.b16 %v989, %v988
        %v1101 = vpack.c.b16 %v991, %v990
        %v1102 = vpack.c.b16 %v993, %v992
        %v1103 = vpack.c.b16 %v995, %v994
        %v1104 = vpack.c.b16 %v997, %v996
        %v1105 = vpack.c.b16 %v999, %v998
        %v1106 = vpack.c.b16 %v1001, %v1000
        %v1107 = vpack.c.b16 %v1003, %v1002
        %v1108 = vpack.c.b16 %v1005, %v1004
        %v1109 = vpack.c.b16 %v1007, %v1006
        %v1110 = vpack.c.b16 %v1009, %v1008
        %v1111 = vpack.c.b16 %v1011, %v1010
        %v1112 = vpack.c.b16 %v1013, %v1012
        %v1113 = vpack.c.b16 %v1015, %v1014
        %v1114 = vpack.c.b16 %v1017, %v1016
        %v1115 = vpack.c.b16 %v1019, %v1018
        %v1116 = vpack.c.b16 %v1021, %v1020
        %v1117 = vpack.c.b16 %v1023, %v1022
        %v1118 = vpack.c.b16 %v1025, %v1024
        %v1119 = vpack.c.b16 %v1027, %v1026
        %v1120 = vpack.c.b16 %v1029, %v1028
        %v1121 = vpack.c.b16 %v1031, %v1030
        %v1122 = vpack.c.b16 %v1033, %v1032
        %v1123 = vpack.c.b16 %v1035, %v1034
        %v1124 = vpack.c.b16 %v1037, %v1036
        %v1125 = vpack.c.b16 %v1039, %v1038
        %v1126 = vpack.c.b16 %v1041, %v1040
        %v1127 = vpack.c.b16 %v1043, %v1042
        %v1128 = vpack.c.b16 %v1045, %v1044
        %v1129 = vpack.c.b16 %v1047, %v1046
        %v1130 = vpack.c.b16 %v1049, %v1048
        %v1131 = vpack.c.b16 %v1051, %v1050
        %v1132 = vpack.c.b16 %v1053, %v1052
        %v1133 = vpack.c.b16 %v1055, %v1054
        %v1134 = vpack.c.b16 %v1057, %v1056
        %v1135 = vpack.c.b16 %v1059, %v1058
        %v1136 = vpack.c.b16 %v1061, %v1060
        %v1137 = vpack.c.b16 %v1063, %v1062
        %v1138 = vpack.c.b16 %v1065, %v1064
        %v1139 = vpack.c.b16 %v1067, %v1066
        %1212 = vmatprep.subr.bf16.mxu0 0
        %1213 = vmatpush1.bf16.msra.mxu0 %v1075
        %1214 = vmatprep.subr.bf16.mxu0 0
        %1215 = vmatpush1.bf16.msra.mxu0 %v1074
        %1216 = vmatprep.subr.bf16.mxu0 0
        %1217 = vmatpush1.bf16.msra.mxu0 %v1073
        %1218 = vmatprep.subr.bf16.mxu0 0
        %1219 = vmatpush1.bf16.msra.mxu0 %v1072
        %1220 = vmatprep.subr.bf16.mxu0 0
        %1221 = vmatpush1.bf16.msra.mxu0 %v1071
        %1222 = vmatprep.subr.bf16.mxu0 0
        %1223 = vmatpush1.bf16.msra.mxu0 %v1070
        %1224 = vmatprep.subr.bf16.mxu0 0
        %1225 = vmatpush1.bf16.msra.mxu0 %v1069
        %1226 = vmatprep.subr.bf16.mxu0 0
        %1227 = vmatpush1.bf16.msra.mxu0 %v1068
        %1228 = vmatprep.subr.bf16.mxu0 0
        %1229 = vmatpush2.bf16.msra.mxu0 %v1083
        %1230 = vmatprep.subr.bf16.mxu0 0
        %1231 = vmatpush2.bf16.msra.mxu0 %v1082
        %1232 = vmatprep.subr.bf16.mxu0 0
        %1233 = vmatpush2.bf16.msra.mxu0 %v1081
        %1234 = vmatprep.subr.bf16.mxu0 0
        %1235 = vmatpush2.bf16.msra.mxu0 %v1080
        %1236 = vmatprep.subr.bf16.mxu0 0
        %1237 = vmatpush2.bf16.msra.mxu0 %v1079
        %1238 = vmatprep.subr.bf16.mxu0 0
        %1239 = vmatpush2.bf16.msra.mxu0 %v1078
        %1240 = vmatprep.subr.bf16.mxu0 0
        %1241 = vmatpush2.bf16.msra.mxu0 %v1077
        %1242 = vmatprep.subr.bf16.mxu0 0
        %1243 = vmatpush2.bf16.msra.mxu0 %v1076
        %1244 = vmatprep.mubr.bf16.mxu0 %v709
        %1245 = vmatmul.mubr.bf16.gmra.mxu0 %v708
        %v1246 = vpop.f32.mrf.mxu0
        %v1247 = vadd.f32 0.0, %v1246
        %v1248 = vpop.f32.mrf.mxu0
        %v1249 = vpop.f32.mrf.mxu0
        %v1250 = vadd.f32 0.0, %v1249
        %v1251 = vpop.f32.mrf.mxu0
        %1252 = vmatprep.mubr.bf16.mxu0 %v718
        %1253 = vmatmul.mubr.bf16.gmra.mxu0 %v717
        %v1254 = vpop.f32.mrf.mxu0
        %v1255 = vadd.f32 0.0, %v1254
        %v1256 = vpop.f32.mrf.mxu0
        %v1257 = vpop.f32.mrf.mxu0
        %v1258 = vadd.f32 0.0, %v1257
        %v1259 = vpop.f32.mrf.mxu0
        %1260 = vmatprep.mubr.bf16.mxu0 %v727
        %1261 = vmatmul.mubr.bf16.gmra.mxu0 %v726
        %v1262 = vpop.f32.mrf.mxu0
        %v1263 = vadd.f32 0.0, %v1262
        %v1264 = vpop.f32.mrf.mxu0
        %v1265 = vpop.f32.mrf.mxu0
        %v1266 = vadd.f32 0.0, %v1265
        %v1267 = vpop.f32.mrf.mxu0
        %1268 = vmatprep.mubr.bf16.mxu0 %v736
        %1269 = vmatmul.mubr.bf16.gmra.mxu0 %v735
        %v1270 = vpop.f32.mrf.mxu0
        %v1271 = vadd.f32 0.0, %v1270
        %v1272 = vpop.f32.mrf.mxu0
        %v1273 = vpop.f32.mrf.mxu0
        %v1274 = vadd.f32 0.0, %v1273
        %v1275 = vpop.f32.mrf.mxu0
        %1276 = vdwg.mxu0
        %1277 = vmatprep.subr.bf16.mxu0 0
        %1278 = vmatpush1.bf16.msra.mxu0 %v1091
        %1279 = vmatprep.subr.bf16.mxu0 0
        %1280 = vmatpush1.bf16.msra.mxu0 %v1090
        %1281 = vmatprep.subr.bf16.mxu0 0
        %1282 = vmatpush1.bf16.msra.mxu0 %v1089
        %1283 = vmatprep.subr.bf16.mxu0 0
        %1284 = vmatpush1.bf16.msra.mxu0 %v1088
        %1285 = vmatprep.subr.bf16.mxu0 0
        %1286 = vmatpush1.bf16.msra.mxu0 %v1087
        %1287 = vmatprep.subr.bf16.mxu0 0
        %1288 = vmatpush1.bf16.msra.mxu0 %v1086
        %1289 = vmatprep.subr.bf16.mxu0 0
        %1290 = vmatpush1.bf16.msra.mxu0 %v1085
        %1291 = vmatprep.subr.bf16.mxu0 0
        %1292 = vmatpush1.bf16.msra.mxu0 %v1084
        %1293 = vmatprep.subr.bf16.mxu0 0
        %1294 = vmatpush2.bf16.msra.mxu0 %v1099
        %1295 = vmatprep.subr.bf16.mxu0 0
        %1296 = vmatpush2.bf16.msra.mxu0 %v1098
        %1297 = vmatprep.subr.bf16.mxu0 0
        %1298 = vmatpush2.bf16.msra.mxu0 %v1097
        %1299 = vmatprep.subr.bf16.mxu0 0
        %1300 = vmatpush2.bf16.msra.mxu0 %v1096
        %1301 = vmatprep.subr.bf16.mxu0 0
        %1302 = vmatpush2.bf16.msra.mxu0 %v1095
        %1303 = vmatprep.subr.bf16.mxu0 0
        %1304 = vmatpush2.bf16.msra.mxu0 %v1094
        %1305 = vmatprep.subr.bf16.mxu0 0
        %1306 = vmatpush2.bf16.msra.mxu0 %v1093
        %1307 = vmatprep.subr.bf16.mxu0 0
        %1308 = vmatpush2.bf16.msra.mxu0 %v1092
        %1309 = vmatprep.mubr.bf16.mxu0 %v711
        %1310 = vmatmul.mubr.bf16.gmra.mxu0 %v710
        %v1311 = vpop.f32.mrf.mxu0
        %v1312 = vadd.f32 %v1247, %v1311
        %v1313 = vpop.f32.mrf.mxu0
        %v1314 = vpop.f32.mrf.mxu0
        %v1315 = vadd.f32 %v1250, %v1314
        %v1316 = vpop.f32.mrf.mxu0
        %1317 = vmatprep.mubr.bf16.mxu0 %v720
        %1318 = vmatmul.mubr.bf16.gmra.mxu0 %v719
        %v1319 = vpop.f32.mrf.mxu0
        %v1320 = vadd.f32 %v1255, %v1319
        %v1321 = vpop.f32.mrf.mxu0
        %v1322 = vpop.f32.mrf.mxu0
        %v1323 = vadd.f32 %v1258, %v1322
        %v1324 = vpop.f32.mrf.mxu0
        %1325 = vmatprep.mubr.bf16.mxu0 %v729
        %1326 = vmatmul.mubr.bf16.gmra.mxu0 %v728
        %v1327 = vpop.f32.mrf.mxu0
        %v1328 = vadd.f32 %v1263, %v1327
        %v1329 = vpop.f32.mrf.mxu0
        %v1330 = vpop.f32.mrf.mxu0
        %v1331 = vadd.f32 %v1266, %v1330
        %v1332 = vpop.f32.mrf.mxu0
        %1333 = vmatprep.mubr.bf16.mxu0 %v738
        %1334 = vmatmul.mubr.bf16.gmra.mxu0 %v737
        %v1335 = vpop.f32.mrf.mxu0
        %v1336 = vadd.f32 %v1271, %v1335
        %v1337 = vpop.f32.mrf.mxu0
        %v1338 = vpop.f32.mrf.mxu0
        %v1339 = vadd.f32 %v1274, %v1338
        %v1340 = vpop.f32.mrf.mxu0
        %1341 = vdwg.mxu0
        %1342 = vmatprep.subr.bf16.mxu0 0
        %1343 = vmatpush1.bf16.msra.mxu0 %v1107
        %1344 = vmatprep.subr.bf16.mxu0 0
        %1345 = vmatpush1.bf16.msra.mxu0 %v1106
        %1346 = vmatprep.subr.bf16.mxu0 0
        %1347 = vmatpush1.bf16.msra.mxu0 %v1105
        %1348 = vmatprep.subr.bf16.mxu0 0
        %1349 = vmatpush1.bf16.msra.mxu0 %v1104
        %1350 = vmatprep.subr.bf16.mxu0 0
        %1351 = vmatpush1.bf16.msra.mxu0 %v1103
        %1352 = vmatprep.subr.bf16.mxu0 0
        %1353 = vmatpush1.bf16.msra.mxu0 %v1102
        %1354 = vmatprep.subr.bf16.mxu0 0
        %1355 = vmatpush1.bf16.msra.mxu0 %v1101
        %1356 = vmatprep.subr.bf16.mxu0 0
        %1357 = vmatpush1.bf16.msra.mxu0 %v1100
        %1358 = vmatprep.subr.bf16.mxu0 0
        %1359 = vmatpush2.bf16.msra.mxu0 %v1115
        %1360 = vmatprep.subr.bf16.mxu0 0
        %1361 = vmatpush2.bf16.msra.mxu0 %v1114
        %1362 = vmatprep.subr.bf16.mxu0 0
        %1363 = vmatpush2.bf16.msra.mxu0 %v1113
        %1364 = vmatprep.subr.bf16.mxu0 0
        %1365 = vmatpush2.bf16.msra.mxu0 %v1112
        %1366 = vmatprep.subr.bf16.mxu0 0
        %1367 = vmatpush2.bf16.msra.mxu0 %v1111
        %1368 = vmatprep.subr.bf16.mxu0 0
        %1369 = vmatpush2.bf16.msra.mxu0 %v1110
        %1370 = vmatprep.subr.bf16.mxu0 0
        %1371 = vmatpush2.bf16.msra.mxu0 %v1109
        %1372 = vmatprep.subr.bf16.mxu0 0
        %1373 = vmatpush2.bf16.msra.mxu0 %v1108
        %1374 = vmatprep.mubr.bf16.mxu0 %v713
        %1375 = vmatmul.mubr.bf16.gmra.mxu0 %v712
        %v1376 = vpop.f32.mrf.mxu0
        %v1377 = vadd.f32 %v1312, %v1376
        %v1378 = vpop.f32.mrf.mxu0
        %v1379 = vpop.f32.mrf.mxu0
        %v1380 = vadd.f32 %v1315, %v1379
        %v1381 = vpop.f32.mrf.mxu0
        %1382 = vmatprep.mubr.bf16.mxu0 %v722
        %1383 = vmatmul.mubr.bf16.gmra.mxu0 %v721
        %v1384 = vpop.f32.mrf.mxu0
        %v1385 = vadd.f32 %v1320, %v1384
        %v1386 = vpop.f32.mrf.mxu0
        %v1387 = vpop.f32.mrf.mxu0
        %v1388 = vadd.f32 %v1323, %v1387
        %v1389 = vpop.f32.mrf.mxu0
        %1390 = vmatprep.mubr.bf16.mxu0 %v731
        %1391 = vmatmul.mubr.bf16.gmra.mxu0 %v730
        %v1392 = vpop.f32.mrf.mxu0
        %v1393 = vadd.f32 %v1328, %v1392
        %v1394 = vpop.f32.mrf.mxu0
        %v1395 = vpop.f32.mrf.mxu0
        %v1396 = vadd.f32 %v1331, %v1395
        %v1397 = vpop.f32.mrf.mxu0
        %1398 = vmatprep.mubr.bf16.mxu0 %v740
        %1399 = vmatmul.mubr.bf16.gmra.mxu0 %v739
        %v1400 = vpop.f32.mrf.mxu0
        %v1401 = vadd.f32 %v1336, %v1400
        %v1402 = vpop.f32.mrf.mxu0
        %v1403 = vpop.f32.mrf.mxu0
        %v1404 = vadd.f32 %v1339, %v1403
        %v1405 = vpop.f32.mrf.mxu0
        %1406 = vdwg.mxu0
        %1407 = vmatprep.subr.bf16.mxu0 0
        %1408 = vmatpush1.bf16.msra.mxu0 %v1123
        %1409 = vmatprep.subr.bf16.mxu0 0
        %1410 = vmatpush1.bf16.msra.mxu0 %v1122
        %1411 = vmatprep.subr.bf16.mxu0 0
        %1412 = vmatpush1.bf16.msra.mxu0 %v1121
        %1413 = vmatprep.subr.bf16.mxu0 0
        %1414 = vmatpush1.bf16.msra.mxu0 %v1120
        %1415 = vmatprep.subr.bf16.mxu0 0
        %1416 = vmatpush1.bf16.msra.mxu0 %v1119
        %1417 = vmatprep.subr.bf16.mxu0 0
        %1418 = vmatpush1.bf16.msra.mxu0 %v1118
        %1419 = vmatprep.subr.bf16.mxu0 0
        %1420 = vmatpush1.bf16.msra.mxu0 %v1117
        %1421 = vmatprep.subr.bf16.mxu0 0
        %1422 = vmatpush1.bf16.msra.mxu0 %v1116
        %1423 = vmatprep.subr.bf16.mxu0 0
        %1424 = vmatpush2.bf16.msra.mxu0 %v1131
        %1425 = vmatprep.subr.bf16.mxu0 0
        %1426 = vmatpush2.bf16.msra.mxu0 %v1130
        %1427 = vmatprep.subr.bf16.mxu0 0
        %1428 = vmatpush2.bf16.msra.mxu0 %v1129
        %1429 = vmatprep.subr.bf16.mxu0 0
        %1430 = vmatpush2.bf16.msra.mxu0 %v1128
        %1431 = vmatprep.subr.bf16.mxu0 0
        %1432 = vmatpush2.bf16.msra.mxu0 %v1127
        %1433 = vmatprep.subr.bf16.mxu0 0
        %1434 = vmatpush2.bf16.msra.mxu0 %v1126
        %1435 = vmatprep.subr.bf16.mxu0 0
        %1436 = vmatpush2.bf16.msra.mxu0 %v1125
        %1437 = vmatprep.subr.bf16.mxu0 0
        %1438 = vmatpush2.bf16.msra.mxu0 %v1124
        %1439 = vmatprep.mubr.bf16.mxu0 %v715
        %1440 = vmatmul.mubr.bf16.gmra.mxu0 %v714
        %v1441 = vpop.f32.mrf.mxu0
        %v1442 = vadd.f32 %v1377, %v1441
        %v1443 = vpop.f32.mrf.mxu0
        %v1444 = vpop.f32.mrf.mxu0
        %v1445 = vadd.f32 %v1380, %v1444
        %v1446 = vpop.f32.mrf.mxu0
        %1447 = vmatprep.mubr.bf16.mxu0 %v724
        %1448 = vmatmul.mubr.bf16.gmra.mxu0 %v723
        %v1449 = vpop.f32.mrf.mxu0
        %v1450 = vadd.f32 %v1385, %v1449
        %v1451 = vpop.f32.mrf.mxu0
        %v1452 = vpop.f32.mrf.mxu0
        %v1453 = vadd.f32 %v1388, %v1452
        %v1454 = vpop.f32.mrf.mxu0
        %1455 = vmatprep.mubr.bf16.mxu0 %v733
        %1456 = vmatmul.mubr.bf16.gmra.mxu0 %v732
        %v1457 = vpop.f32.mrf.mxu0
        %v1458 = vadd.f32 %v1393, %v1457
        %v1459 = vpop.f32.mrf.mxu0
        %v1460 = vpop.f32.mrf.mxu0
        %v1461 = vadd.f32 %v1396, %v1460
        %v1462 = vpop.f32.mrf.mxu0
        %1463 = vmatprep.mubr.bf16.mxu0 %v742
        %1464 = vmatmul.mubr.bf16.gmra.mxu0 %v741
        %v1465 = vpop.f32.mrf.mxu0
        %v1466 = vadd.f32 %v1401, %v1465
        %v1467 = vpop.f32.mrf.mxu0
        %v1468 = vpop.f32.mrf.mxu0
        %v1469 = vadd.f32 %v1404, %v1468
        %v1470 = vpop.f32.mrf.mxu0
        %1471 = vdwg.mxu0
        %1472 = vmatprep.subr.bf16.mxu0 0
        %1473 = vmatpush1.bf16.msra.mxu0 %v1139
        %1474 = vmatprep.subr.bf16.mxu0 0
        %1475 = vmatpush1.bf16.msra.mxu0 %v1138
        %1476 = vmatprep.subr.bf16.mxu0 0
        %1477 = vmatpush1.bf16.msra.mxu0 %v1137
        %1478 = vmatprep.subr.bf16.mxu0 0
        %1479 = vmatpush1.bf16.msra.mxu0 %v1136
        %1480 = vmatprep.subr.bf16.mxu0 0
        %1481 = vmatpush1.bf16.msra.mxu0 %v1135
        %1482 = vmatprep.subr.bf16.mxu0 0
        %1483 = vmatpush1.bf16.msra.mxu0 %v1134
        %1484 = vmatprep.subr.bf16.mxu0 0
        %1485 = vmatpush1.bf16.msra.mxu0 %v1133
        %1486 = vmatprep.subr.bf16.mxu0 0
        %1487 = vmatpush1.bf16.msra.mxu0 %v1132
        %1488 = vmatprep.subr.bf16.mxu0 0
        %1489 = vmatpush2.bf16.msra.mxu0 0
        %1490 = vmatprep.subr.bf16.mxu0 0
        %1491 = vmatpush2.bf16.msra.mxu0 0
        %1492 = vmatprep.subr.bf16.mxu0 0
        %1493 = vmatpush2.bf16.msra.mxu0 0
        %1494 = vmatprep.subr.bf16.mxu0 0
        %1495 = vmatpush2.bf16.msra.mxu0 0
        %1496 = vmatprep.subr.bf16.mxu0 0
        %1497 = vmatpush2.bf16.msra.mxu0 0
        %1498 = vmatprep.subr.bf16.mxu0 0
        %1499 = vmatpush2.bf16.msra.mxu0 0
        %1500 = vmatprep.subr.bf16.mxu0 0
        %1501 = vmatpush2.bf16.msra.mxu0 0
        %1502 = vmatprep.subr.bf16.mxu0 0
        %1503 = vmatpush2.bf16.msra.mxu0 0
        %1504 = vmatprep.mubr.bf16.mxu0 0
        %1505 = vmatmul.mubr.bf16.gmra.mxu0 %v716
        %v1506 = vpop.f32.mrf.mxu0
        %v1507 = vadd.f32 %v1442, %v1506
        %v1508 = vpop.f32.mrf.mxu0
        %v1509 = vpop.f32.mrf.mxu0
        %v1510 = vadd.f32 %v1445, %v1509
        %v1511 = vpop.f32.mrf.mxu0
        %1512 = vmatprep.mubr.bf16.mxu0 0
        %1513 = vmatmul.mubr.bf16.gmra.mxu0 %v725
        %v1514 = vpop.f32.mrf.mxu0
        %v1515 = vadd.f32 %v1450, %v1514
        %v1516 = vpop.f32.mrf.mxu0
        %v1517 = vpop.f32.mrf.mxu0
        %v1518 = vadd.f32 %v1453, %v1517
        %v1519 = vpop.f32.mrf.mxu0
        %1520 = vmatprep.mubr.bf16.mxu0 0
        %1521 = vmatmul.mubr.bf16.gmra.mxu0 %v734
        %v1522 = vpop.f32.mrf.mxu0
        %v1523 = vadd.f32 %v1458, %v1522
        %v1524 = vpop.f32.mrf.mxu0
        %v1525 = vpop.f32.mrf.mxu0
        %v1526 = vadd.f32 %v1461, %v1525
        %v1527 = vpop.f32.mrf.mxu0
        %1528 = vmatprep.mubr.bf16.mxu0 0
        %1529 = vmatmul.mubr.bf16.gmra.mxu0 %v743
        %v1530 = vpop.f32.mrf.mxu0
        %v1531 = vadd.f32 %v1466, %v1530
        %v1532 = vpop.f32.mrf.mxu0
        %v1533 = vpop.f32.mrf.mxu0
        %v1534 = vadd.f32 %v1469, %v1533
        %v1535 = vpop.f32.mrf.mxu0
        %1536 = vdwg.mxu0
        %1537 = vst [vmem:[%s186] sm:$0xff] %v1507
        %1538 = vst [vmem:[%s186 + $0x8] sm:$0xff] %v1510
        %1539 = vst [vmem:[%s186 + $0x10] sm:$0xff] %v1515
        %1540 = vst [vmem:[%s186 + $0x18] sm:$0xff] %v1518
        %1541 = vst [vmem:[%s186 + $0x20] sm:$0xff] %v1523
        %1542 = vst [vmem:[%s186 + $0x28] sm:$0xff] %v1526
        %1543 = vst [vmem:[%s186 + $0x30] sm:$0xff] %v1531
        %1544 = vst [vmem:[%s186 + $0x38] sm:$0xff] %v1534
        %v1545 = vadd.f32 %v1507, %v1510
        %v1546 = vadd.f32 %v1545, %v1515
        %v1547 = vadd.f32 %v1546, %v1518
        %v1548 = vadd.f32 %v1547, %v1523
        %v1549 = vadd.f32 %v1548, %v1526
        %v1550 = vadd.f32 %v1549, %v1531
        %v1551 = vadd.f32 %v1550, %v1534
        %v1552 = vrot.slane %v1551, 4
        %v1553 = vadd.f32 %v1551, %v1552
        %v1554 = vrot.slane %v1553, 2
        %v1555 = vadd.f32 %v1553, %v1554
        %v1556 = vrot.slane %v1555, 1
        %v1557 = vadd.f32 %v1555, %v1556
        %v1558 = vmul.f32 %v1507, %v1507
        %v1559 = vmul.f32 %v1510, %v1510
        %v1560 = vmul.f32 %v1515, %v1515
        %v1561 = vmul.f32 %v1518, %v1518
        %v1562 = vmul.f32 %v1523, %v1523
        %v1563 = vmul.f32 %v1526, %v1526
        %v1564 = vmul.f32 %v1531, %v1531
        %v1565 = vmul.f32 %v1534, %v1534
        %v1566 = vadd.f32 %v1558, %v1559
        %v1567 = vadd.f32 %v1566, %v1560
        %v1568 = vadd.f32 %v1567, %v1561
        %v1569 = vadd.f32 %v1568, %v1562
        %v1570 = vadd.f32 %v1569, %v1563
        %v1571 = vadd.f32 %v1570, %v1564
        %v1572 = vadd.f32 %v1571, %v1565
        %v1573 = vrot.slane %v1572, 4
        %v1574 = vadd.f32 %v1572, %v1573
        %v1575 = vrot.slane %v1574, 2
        %v1576 = vadd.f32 %v1574, %v1575
        %v1577 = vrot.slane %v1576, 1
        %v1578 = vadd.f32 %v1576, %v1577
        %vm1579 = vcmask 1040384
        %v1580 = vsel %vm1579, %v1557, %v1578
        %1581 = vst [vmem:[%s193] sm:$0x3] %v1580
        %s1582 = sand.u32 %s90, 1
        %s1583 = scalar_lea.sflag [#allocation3], %s1582
        %s1584 = sand.u32 %s90, 1
        %s1585 = smul.addr %s1584, 64
        %s1586 = scalar_lea.vmem [#allocation2], %s1585
        %s1587 = sand.u32 %s118, 1
        %s1588 = scalar_lea.sflag [#allocation5], %s1587
        %s1589 = sand.u32 %s118, 1
        %s1590 = smul.addr %s1589, 2
        %s1591 = scalar_lea.vmem [#allocation4], %s1590
        // Predicated region
        $region29: #{tpu_custom_call.1} parent=27 // pred_check
          %p1592 = pneg %p100
        $region30: #{tpu_custom_call.1} parent=27 // pred_check_branch
          %1594 = sbr.rel (%p1592) target = $region32
        $region31: #{tpu_custom_call.1} parent=27 // pred_region
          %s1595 = smul.u32 8, %s26
          %s1597 = ssub.s32 1024, 1024
          %1598 = vsyncadd %s1583, %s1597
          %s1599 = smul.addr %s25, 8
          %s1600 = sadd.s32 %s1595, %s1599
          %s1601 = smul.addr %s1600, 128
          %s1602 = scalar_lea.hbm %s2, %s1601
          %s1603 = sshll.u32 %s1586, 4
          %s1604 = int_to_ptr.vmem [resolvable:$true] %s1603
          %1609 = dma.vmem_to_hbm [thread:$0]  %s1604, 1024, %s1602, %s1583, 128, 128, 8
        $region32: #{tpu_custom_call.1} parent=27 // pred_fallthru
          _
        // Predicated region
        $region33: #{tpu_custom_call.1} parent=27 // pred_check
          %p1610 = pneg %p128
        $region34: #{tpu_custom_call.1} parent=27 // pred_check_branch
          %1612 = sbr.rel (%p1610) target = $region36
        $region35: #{tpu_custom_call.1} parent=27 // pred_region
          %s1614 = ssub.s32 32, 32
          %1615 = vsyncadd %s1588, %s1614
          %s1616 = sadd.s32 %s26, %s25
          %s1617 = smul.addr %s1616, 32
          %s1618 = scalar_lea.hbm %s3, %s1617
          %s1620 = sshll.u32 %s1591, 4
          %s1621 = int_to_ptr.vmem [resolvable:$true] %s1620
          %1623 = dma.vmem_to_hbm [thread:$0]  %s1621, 32, %s1618, %s1588
        $region36: #{tpu_custom_call.1} parent=27 // pred_fallthru
          _
      $region28: #{tpu_custom_call.1} parent=5 // pred_fallthru
        _
      %p1624 = scmp.le.s32.totalorder 2, %s16
      // Predicated region
      $region37: #{tpu_custom_call.1} parent=5 // pred_check
        %p1625 = pneg %p1624
      $region38: #{tpu_custom_call.1} parent=5 // pred_check_branch
        %1627 = sbr.rel (%p1625) target = $region40
      $region39: #{tpu_custom_call.1} parent=5 // pred_region
        %s1628 = ssub.s32 %s16, 2
        // Predicated region
        $region41: #{tpu_custom_call.1} parent=39 // pred_check
          %p1629 = pneg %p106
        $region42: #{tpu_custom_call.1} parent=39 // pred_check_branch
          %1631 = sbr.rel (%p1629) target = $region44
        $region43: #{tpu_custom_call.1} parent=39 // pred_region
          %s1632 = sand.u32 %s91, 1
          %s1633 = scalar_lea.sflag [#allocation3], %s1632
          %s1634 = sand.u32 %s91, 1
          %s1635 = smul.addr %s1634, 64
          %s1636 = scalar_lea.vmem [#allocation2], %s1635
          %1637 = dma.done %s1633, 1024
        $region44: #{tpu_custom_call.1} parent=39 // pred_fallthru
          _
        // Predicated region
        $region45: #{tpu_custom_call.1} parent=39 // pred_check
          %p1638 = pneg %p134
        $region46: #{tpu_custom_call.1} parent=39 // pred_check_branch
          %1640 = sbr.rel (%p1638) target = $region48
        $region47: #{tpu_custom_call.1} parent=39 // pred_region
          %s1641 = sand.u32 %s119, 1
          %s1642 = scalar_lea.sflag [#allocation5], %s1641
          %s1643 = sand.u32 %s119, 1
          %s1644 = smul.addr %s1643, 2
          %s1645 = scalar_lea.vmem [#allocation4], %s1644
          %1646 = dma.done %s1642, 32
        $region48: #{tpu_custom_call.1} parent=39 // pred_fallthru
          _
      $region40: #{tpu_custom_call.1} parent=5 // pred_fallthru
        _
    $region6: #{tpu_custom_call.1} parent=1 // loop_footer
      %s20 = sadd.s32 1, %s16
    $region7: #{tpu_custom_call.1} parent=1 // loop_footer_branch
      %15 = sbr.rel target = $region3
    $region8: #{tpu_custom_call.1} parent=1 // loop_exit
      _
    %1647 = vsyncpa [#allocation3], 1
    %s1648 = scalar_lea.sflag [#allocation3], 1
    %1649 = vsyncpa %s1648, 1
    %1650 = vsyncpa [#allocation5], 1
    %s1651 = scalar_lea.sflag [#allocation5], 1
    %1652 = vsyncpa %s1651, 1

</llo_original>
